<compile_context>
chip_gen: v7x
topology: tpu7x:2x2x1
jax: 0.10.0
libtpu: 0.0.40
codegen_flags: <defaults>
</compile_context>

<pallas_src>
import jax
import jax.numpy as jnp
from jax.experimental import pallas as pl
from jax.experimental.pallas import tpu as pltpu


# ----------------------------------------------------------------------------
# Fused GRU + projection kernel (single grid step, whole problem in VMEM).
# ----------------------------------------------------------------------------
def _make_gru_encoder_kernel(batch, ts, hidden_dim, latent_dim):
    B, H, L = batch, hidden_dim, latent_dim
    f32, bf16 = jnp.float32, jnp.bfloat16

    def kernel(x_ref, wi_ref, wh_ref, bgi_ref, bhn_ref, pw_ref, pb_ref,
               o_ref, hseq_ref):
        # x_ref  : (ts*B, in)   bf16, time-major (row = t*B + b)
        # wi_ref : (in, 3H)     bf16, columns ordered [r | z | n]
        # wh_ref : (H, 3H)      bf16, columns ordered [r | z | n]
        # bgi_ref: (1, 3H)      f32, [b_r+b_hr | b_z+b_hz | b_in]
        # bhn_ref: (1, H)       f32, hidden n-gate bias (stays under r*)
        # pw_ref : (ts*H, L)    bf16, proj_w.T (row index = t*H + h)
        # pb_ref : (1, L)       f32
        # o_ref  : (B, L)       f32
        # hseq_ref: (B, ts*H)   bf16 scratch holding every h_t for projection

        # Hoisted input-gate matmul for ALL timesteps (off the serial chain).
        gi = (jnp.dot(x_ref[...], wi_ref[...], preferred_element_type=f32)
              + bgi_ref[...])                       # (ts*B, 3H) f32
        # Split once into per-gate slabs (lane selects, done outside the loop).
        gir = gi[:, 0:H]
        giz = gi[:, H:2 * H]
        gin = gi[:, 2 * H:3 * H]

        wh3 = wh_ref[...]                           # (H, 3H) resident bf16
        b_hn = bhn_ref[...]                         # (1, H) f32

        h = jnp.zeros((B, H), f32)
        hb = jnp.zeros((B, H), bf16)

        # ts is small & static: fully unrolled recurrence.  Exactly one MXU
        # push (hb @ [Whr|Whz|Whn]) per step sits on the serial h chain.
        for t in range(ts):
            gh = jnp.dot(hb, wh3, preferred_element_type=f32)   # (B, 3H)
            r = jax.nn.sigmoid(gir[t * B:(t + 1) * B, :] + gh[:, 0:H])
            z = jax.nn.sigmoid(giz[t * B:(t + 1) * B, :] + gh[:, H:2 * H])
            n = jnp.tanh(gin[t * B:(t + 1) * B, :]
                         + r * (gh[:, 2 * H:3 * H] + b_hn))
            h = (1.0 - z) * n + z * h
            hb = h.astype(bf16)
            # Stash h_t for the fused projection (bounds its live range).
            hseq_ref[:, t * H:(t + 1) * H] = hb

        # Single K = ts*H projection matmul + bias, written once.
        out = jnp.dot(hseq_ref[...], pw_ref[...], preferred_element_type=f32)
        o_ref[...] = (out + pb_ref[...]).astype(o_ref.dtype)

    return kernel


# ----------------------------------------------------------------------------
# One-time parameter packing (hoisted out of the per-call forward path).
# ----------------------------------------------------------------------------
def pack_gru_encoder_params(params, *, hidden_dim):
    H = hidden_dim
    b_ih, b_hh = params["b_ih"], params["b_hh"]
    b_gi = jnp.concatenate([
        b_ih[0:H] + b_hh[0:H],            # r gate: hidden bias folded in
        b_ih[H:2 * H] + b_hh[H:2 * H],    # z gate: hidden bias folded in
        b_ih[2 * H:3 * H],                # n gate: input part only
    ]).reshape(1, 3 * H).astype(jnp.float32)
    return {
        "wi3": params["w_ih"].T.astype(jnp.bfloat16),          # (in, 3H)
        "wh3": params["w_hh"].T.astype(jnp.bfloat16),          # (H, 3H)
        "b_gi": b_gi,                                          # (1, 3H)
        "b_hn": b_hh[2 * H:3 * H].reshape(1, H).astype(jnp.float32),
        "pwt": params["proj_w"].T.astype(jnp.bfloat16),        # (ts*H, L)
        "pb": params["proj_b"].reshape(1, -1).astype(jnp.float32),
    }


# ----------------------------------------------------------------------------
# Forward wrapper: time-major activation layout + single pallas_call.
# ----------------------------------------------------------------------------
def simple_gru_encoder_forward(x, packed, *, input_dim, hidden_dim, latent_dim,
                               ts):
    batch = x.shape[0]
    H, L = hidden_dim, latent_dim

    # Time-major (row = t*batch + b): per-step gate slices in the kernel are
    # contiguous static views.
    x2d = (x.reshape(batch, ts, input_dim)
             .transpose(1, 0, 2)
             .reshape(ts * batch, input_dim)
             .astype(jnp.bfloat16))

    kernel = _make_gru_encoder_kernel(batch, ts, H, L)
    return pl.pallas_call(
        kernel,
        out_shape=jax.ShapeDtypeStruct((batch, L), jnp.float32),
        grid_spec=pltpu.PrefetchScalarGridSpec(
            num_scalar_prefetch=0,
            grid=(1,),
            in_specs=[
                pl.BlockSpec((ts * batch, input_dim), lambda i: (0, 0)),
                pl.BlockSpec((input_dim, 3 * H), lambda i: (0, 0)),
                pl.BlockSpec((H, 3 * H), lambda i: (0, 0)),
                pl.BlockSpec((1, 3 * H), lambda i: (0, 0)),
                pl.BlockSpec((1, H), lambda i: (0, 0)),
                pl.BlockSpec((ts * H, L), lambda i: (0, 0)),
                pl.BlockSpec((1, L), lambda i: (0, 0)),
            ],
            out_specs=pl.BlockSpec((batch, L), lambda i: (0, 0)),
            scratch_shapes=[pltpu.VMEM((batch, ts * H), jnp.bfloat16)],
        ),
        compiler_params=pltpu.CompilerParams(
            dimension_semantics=("arbitrary",)),
    )(x2d, packed["wi3"], packed["wh3"], packed["b_gi"], packed["b_hn"],
      packed["pwt"], packed["pb"])


# ----------------------------------------------------------------------------
# Pure-JAX f32 reference (for correctness check)
# ----------------------------------------------------------------------------
def reference_forward(x, params, *, input_dim, hidden_dim, latent_dim, ts):
    batch = x.shape[0]
    inp = x.reshape(batch, ts, input_dim).transpose(1, 0, 2)
    h = jnp.zeros((batch, hidden_dim), jnp.float32)
    w_ih_t, w_hh_t = params["w_ih"].T, params["w_hh"].T
    outs = []
    for t in range(ts):
        gi = inp[t] @ w_ih_t + params["b_ih"]
        gh = h @ w_hh_t + params["b_hh"]
        i_r, i_z, i_n = jnp.split(gi, 3, axis=-1)
        h_r, h_z, h_n = jnp.split(gh, 3, axis=-1)
        r = jax.nn.sigmoid(i_r + h_r)
        z = jax.nn.sigmoid(i_z + h_z)
        n = jnp.tanh(i_n + r * h_n)
        h = (1.0 - z) * n + z * h
        outs.append(h)
    out = jnp.stack(outs, axis=0).transpose(1, 0, 2).reshape(batch,
                                                             ts * hidden_dim)
    return out @ params["proj_w"].T + params["proj_b"]


if __name__ == "__main__":
    # Small shapes consistent with the module.
    batch, ts = 4, 8
    input_dim, hidden_dim, latent_dim = 16, 32, 8

    key = jax.random.PRNGKey(0)
    keys = jax.random.split(key, 8)

    # Deterministic parameter init (PyTorch-style uniform ranges).
    k_gru = 1.0 / jnp.sqrt(hidden_dim)
    k_lin = 1.0 / jnp.sqrt(hidden_dim * ts)
    params = {
        "w_ih": jax.random.uniform(keys[0], (3 * hidden_dim, input_dim),
                                   jnp.float32, -k_gru, k_gru),
        "w_hh": jax.random.uniform(keys[1], (3 * hidden_dim, hidden_dim),
                                   jnp.float32, -k_gru, k_gru),
        "b_ih": jax.random.uniform(keys[2], (3 * hidden_dim,),
                                   jnp.float32, -k_gru, k_gru),
        "b_hh": jax.random.uniform(keys[3], (3 * hidden_dim,),
                                   jnp.float32, -k_gru, k_gru),
        "proj_w": jax.random.uniform(keys[4], (latent_dim, hidden_dim * ts),
                                     jnp.float32, -k_lin, k_lin),
        "proj_b": jax.random.uniform(keys[5], (latent_dim,),
                                     jnp.float32, -k_lin, k_lin),
    }

    x = jax.random.normal(keys[6], (batch, ts, input_dim), jnp.float32)

    # One-time weight packing (outside the forward path).
    packed = pack_gru_encoder_params(params, hidden_dim=hidden_dim)

    out = simple_gru_encoder_forward(
        x, packed, input_dim=input_dim, hidden_dim=hidden_dim,
        latent_dim=latent_dim, ts=ts)
    out = jax.block_until_ready(out)

    ref = reference_forward(
        x, params, input_dim=input_dim, hidden_dim=hidden_dim,
        latent_dim=latent_dim, ts=ts)

    assert out.shape == (batch, latent_dim), out.shape
    # Tolerance loosened vs. pure-f32 because MXU operands are bf16
    # (accumulation stays f32).
    max_err = float(jnp.max(jnp.abs(out - ref)))
    assert jnp.allclose(out, ref, atol=3e-2, rtol=3e-2), max_err
    print("KERNEL_OK")
</pallas_src>

<mosaic_0001>
module attributes {stable_mosaic.version = 11 : i64} {
  func.func @kernel(%arg0: i32, %arg1: memref<32x16xbf16, #tpu.memory_space<vmem>>, %arg2: memref<16x96xbf16, #tpu.memory_space<vmem>>, %arg3: memref<32x96xbf16, #tpu.memory_space<vmem>>, %arg4: memref<1x96xf32, #tpu.memory_space<vmem>>, %arg5: memref<1x32xf32, #tpu.memory_space<vmem>>, %arg6: memref<256x8xbf16, #tpu.memory_space<vmem>>, %arg7: memref<1x8xf32, #tpu.memory_space<vmem>>, %arg8: memref<4x8xf32, #tpu.memory_space<vmem>>, %arg9: memref<4x256xbf16, #tpu.memory_space<vmem>>) attributes {dimension_semantics = [#tpu.dimension_semantics<arbitrary>], iteration_bounds = array<i64: 1>, scalar_prefetch = 0 : i64, scratch_operands = 1 : i64, tpu.core_type = #tpu.core_type<tc>, window_params = [{pipeline_mode = #tpu.pipeline_mode<synchronous>, transform_indices = @transform_0, window_bounds = array<i64: 32, 16>}, {pipeline_mode = #tpu.pipeline_mode<synchronous>, transform_indices = @transform_1, window_bounds = array<i64: 16, 96>}, {pipeline_mode = #tpu.pipeline_mode<synchronous>, transform_indices = @transform_2, window_bounds = array<i64: 32, 96>}, {pipeline_mode = #tpu.pipeline_mode<synchronous>, transform_indices = @transform_3, window_bounds = array<i64: 1, 96>}, {pipeline_mode = #tpu.pipeline_mode<synchronous>, transform_indices = @transform_4, window_bounds = array<i64: 1, 32>}, {pipeline_mode = #tpu.pipeline_mode<synchronous>, transform_indices = @transform_5, window_bounds = array<i64: 256, 8>}, {pipeline_mode = #tpu.pipeline_mode<synchronous>, transform_indices = @transform_6, window_bounds = array<i64: 1, 8>}, {pipeline_mode = #tpu.pipeline_mode<synchronous>, transform_indices = @transform_7, window_bounds = array<i64: 4, 8>}]} {
    %c0 = arith.constant 0 : index
    %c0_0 = arith.constant 0 : index
    %0 = vector.load %arg1[%c0, %c0_0] : memref<32x16xbf16, #tpu.memory_space<vmem>>, vector<32x16xbf16>
    %c0_1 = arith.constant 0 : index
    %c0_2 = arith.constant 0 : index
    %1 = vector.load %arg2[%c0_1, %c0_2] : memref<16x96xbf16, #tpu.memory_space<vmem>>, vector<16x96xbf16>
    %cst = arith.constant dense<0.000000e+00> : vector<32x96xf32>
    %2 = tpu.matmul %0, %1, %cst {dimension_numbers = #tpu.dot_dimension_numbers<[1], [0], [0], [1], [0, 0, 1, 1], [], []>} : vector<32x16xbf16>, vector<16x96xbf16>, vector<32x96xf32> -> vector<32x96xf32>
    %c0_3 = arith.constant 0 : index
    %c0_4 = arith.constant 0 : index
    %3 = vector.load %arg4[%c0_3, %c0_4] : memref<1x96xf32, #tpu.memory_space<vmem>>, vector<1x96xf32>
    %4 = vector.broadcast %3 : vector<1x96xf32> to vector<32x96xf32>
    %5 = arith.addf %2, %4 : vector<32x96xf32>
    %6 = vector.extract_strided_slice %5 {offsets = [0, 0], sizes = [32, 32], strides = [1, 1]} : vector<32x96xf32> to vector<32x32xf32>
    %7 = vector.extract_strided_slice %5 {offsets = [0, 32], sizes = [32, 32], strides = [1, 1]} : vector<32x96xf32> to vector<32x32xf32>
    %8 = vector.extract_strided_slice %5 {offsets = [0, 64], sizes = [32, 32], strides = [1, 1]} : vector<32x96xf32> to vector<32x32xf32>
    %c0_5 = arith.constant 0 : index
    %c0_6 = arith.constant 0 : index
    %9 = vector.load %arg3[%c0_5, %c0_6] : memref<32x96xbf16, #tpu.memory_space<vmem>>, vector<32x96xbf16>
    %c0_7 = arith.constant 0 : index
    %c0_8 = arith.constant 0 : index
    %10 = vector.load %arg5[%c0_7, %c0_8] : memref<1x32xf32, #tpu.memory_space<vmem>>, vector<1x32xf32>
    %cst_9 = arith.constant 0.000000e+00 : f32
    %11 = vector.broadcast %cst_9 : f32 to vector<4x32xf32>
    %cst_10 = arith.constant 0.000000e+00 : bf16
    %12 = vector.broadcast %cst_10 : bf16 to vector<4x32xbf16>
    %cst_11 = arith.constant dense<0.000000e+00> : vector<4x96xf32>
    %13 = tpu.matmul %12, %9, %cst_11 {dimension_numbers = #tpu.dot_dimension_numbers<[1], [0], [0], [1], [0, 0, 1, 1], [], []>} : vector<4x32xbf16>, vector<32x96xbf16>, vector<4x96xf32> -> vector<4x96xf32>
    %14 = vector.extract_strided_slice %6 {offsets = [0, 0], sizes = [4, 32], strides = [1, 1]} : vector<32x32xf32> to vector<4x32xf32>
    %15 = vector.extract_strided_slice %13 {offsets = [0, 0], sizes = [4, 32], strides = [1, 1]} : vector<4x96xf32> to vector<4x32xf32>
    %16 = arith.addf %14, %15 : vector<4x32xf32>
    %17 = arith.negf %16 : vector<4x32xf32>
    %18 = math.exp %17 : vector<4x32xf32>
    %cst_12 = arith.constant 1.000000e+00 : f32
    %19 = vector.broadcast %cst_12 : f32 to vector<4x32xf32>
    %20 = arith.addf %19, %18 : vector<4x32xf32>
    %21 = arith.divf %19, %20 : vector<4x32xf32>
    %22 = vector.extract_strided_slice %7 {offsets = [0, 0], sizes = [4, 32], strides = [1, 1]} : vector<32x32xf32> to vector<4x32xf32>
    %23 = vector.extract_strided_slice %13 {offsets = [0, 32], sizes = [4, 32], strides = [1, 1]} : vector<4x96xf32> to vector<4x32xf32>
    %24 = arith.addf %22, %23 : vector<4x32xf32>
    %25 = arith.negf %24 : vector<4x32xf32>
    %26 = math.exp %25 : vector<4x32xf32>
    %cst_13 = arith.constant 1.000000e+00 : f32
    %27 = vector.broadcast %cst_13 : f32 to vector<4x32xf32>
    %28 = arith.addf %27, %26 : vector<4x32xf32>
    %29 = arith.divf %27, %28 : vector<4x32xf32>
    %30 = vector.extract_strided_slice %8 {offsets = [0, 0], sizes = [4, 32], strides = [1, 1]} : vector<32x32xf32> to vector<4x32xf32>
    %31 = vector.extract_strided_slice %13 {offsets = [0, 64], sizes = [4, 32], strides = [1, 1]} : vector<4x96xf32> to vector<4x32xf32>
    %32 = vector.broadcast %10 : vector<1x32xf32> to vector<4x32xf32>
    %33 = arith.addf %31, %32 : vector<4x32xf32>
    %34 = arith.mulf %21, %33 : vector<4x32xf32>
    %35 = arith.addf %30, %34 : vector<4x32xf32>
    %36 = math.tanh %35 : vector<4x32xf32>
    %cst_14 = arith.constant 1.000000e+00 : f32
    %37 = vector.broadcast %cst_14 : f32 to vector<4x32xf32>
    %38 = arith.subf %37, %29 : vector<4x32xf32>
    %39 = arith.mulf %38, %36 : vector<4x32xf32>
    %40 = arith.mulf %29, %11 : vector<4x32xf32>
    %41 = arith.addf %39, %40 : vector<4x32xf32>
    %42 = arith.truncf %41 : vector<4x32xf32> to vector<4x32xbf16>
    %c0_15 = arith.constant 0 : index
    %c0_16 = arith.constant 0 : index
    %43 = vector.load %arg9[%c0_15, %c0_16] : memref<4x256xbf16, #tpu.memory_space<vmem>>, vector<4x32xbf16>
    tpu.vector_store %arg9[%c0_15, %c0_16], %42 {strides = array<i32>} : memref<4x256xbf16, #tpu.memory_space<vmem>>, vector<4x32xbf16>,
    %cst_17 = arith.constant dense<0.000000e+00> : vector<4x96xf32>
    %44 = tpu.matmul %42, %9, %cst_17 {dimension_numbers = #tpu.dot_dimension_numbers<[1], [0], [0], [1], [0, 0, 1, 1], [], []>} : vector<4x32xbf16>, vector<32x96xbf16>, vector<4x96xf32> -> vector<4x96xf32>
    %45 = vector.extract_strided_slice %6 {offsets = [4, 0], sizes = [4, 32], strides = [1, 1]} : vector<32x32xf32> to vector<4x32xf32>
    %46 = vector.extract_strided_slice %44 {offsets = [0, 0], sizes = [4, 32], strides = [1, 1]} : vector<4x96xf32> to vector<4x32xf32>
    %47 = arith.addf %45, %46 : vector<4x32xf32>
    %48 = arith.negf %47 : vector<4x32xf32>
    %49 = math.exp %48 : vector<4x32xf32>
    %cst_18 = arith.constant 1.000000e+00 : f32
    %50 = vector.broadcast %cst_18 : f32 to vector<4x32xf32>
    %51 = arith.addf %50, %49 : vector<4x32xf32>
    %52 = arith.divf %50, %51 : vector<4x32xf32>
    %53 = vector.extract_strided_slice %7 {offsets = [4, 0], sizes = [4, 32], strides = [1, 1]} : vector<32x32xf32> to vector<4x32xf32>
    %54 = vector.extract_strided_slice %44 {offsets = [0, 32], sizes = [4, 32], strides = [1, 1]} : vector<4x96xf32> to vector<4x32xf32>
    %55 = arith.addf %53, %54 : vector<4x32xf32>
    %56 = arith.negf %55 : vector<4x32xf32>
    %57 = math.exp %56 : vector<4x32xf32>
    %cst_19 = arith.constant 1.000000e+00 : f32
    %58 = vector.broadcast %cst_19 : f32 to vector<4x32xf32>
    %59 = arith.addf %58, %57 : vector<4x32xf32>
    %60 = arith.divf %58, %59 : vector<4x32xf32>
    %61 = vector.extract_strided_slice %8 {offsets = [4, 0], sizes = [4, 32], strides = [1, 1]} : vector<32x32xf32> to vector<4x32xf32>
    %62 = vector.extract_strided_slice %44 {offsets = [0, 64], sizes = [4, 32], strides = [1, 1]} : vector<4x96xf32> to vector<4x32xf32>
    %63 = vector.broadcast %10 : vector<1x32xf32> to vector<4x32xf32>
    %64 = arith.addf %62, %63 : vector<4x32xf32>
    %65 = arith.mulf %52, %64 : vector<4x32xf32>
    %66 = arith.addf %61, %65 : vector<4x32xf32>
    %67 = math.tanh %66 : vector<4x32xf32>
    %cst_20 = arith.constant 1.000000e+00 : f32
    %68 = vector.broadcast %cst_20 : f32 to vector<4x32xf32>
    %69 = arith.subf %68, %60 : vector<4x32xf32>
    %70 = arith.mulf %69, %67 : vector<4x32xf32>
    %71 = arith.mulf %60, %41 : vector<4x32xf32>
    %72 = arith.addf %70, %71 : vector<4x32xf32>
    %73 = arith.truncf %72 : vector<4x32xf32> to vector<4x32xbf16>
    %c0_21 = arith.constant 0 : index
    %c32 = arith.constant 32 : index
    %74 = vector.load %arg9[%c0_21, %c32] : memref<4x256xbf16, #tpu.memory_space<vmem>>, vector<4x32xbf16>
    tpu.vector_store %arg9[%c0_21, %c32], %73 {strides = array<i32>} : memref<4x256xbf16, #tpu.memory_space<vmem>>, vector<4x32xbf16>,
    %cst_22 = arith.constant dense<0.000000e+00> : vector<4x96xf32>
    %75 = tpu.matmul %73, %9, %cst_22 {dimension_numbers = #tpu.dot_dimension_numbers<[1], [0], [0], [1], [0, 0, 1, 1], [], []>} : vector<4x32xbf16>, vector<32x96xbf16>, vector<4x96xf32> -> vector<4x96xf32>
    %76 = vector.extract_strided_slice %6 {offsets = [8, 0], sizes = [4, 32], strides = [1, 1]} : vector<32x32xf32> to vector<4x32xf32>
    %77 = vector.extract_strided_slice %75 {offsets = [0, 0], sizes = [4, 32], strides = [1, 1]} : vector<4x96xf32> to vector<4x32xf32>
    %78 = arith.addf %76, %77 : vector<4x32xf32>
    %79 = arith.negf %78 : vector<4x32xf32>
    %80 = math.exp %79 : vector<4x32xf32>
    %cst_23 = arith.constant 1.000000e+00 : f32
    %81 = vector.broadcast %cst_23 : f32 to vector<4x32xf32>
    %82 = arith.addf %81, %80 : vector<4x32xf32>
    %83 = arith.divf %81, %82 : vector<4x32xf32>
    %84 = vector.extract_strided_slice %7 {offsets = [8, 0], sizes = [4, 32], strides = [1, 1]} : vector<32x32xf32> to vector<4x32xf32>
    %85 = vector.extract_strided_slice %75 {offsets = [0, 32], sizes = [4, 32], strides = [1, 1]} : vector<4x96xf32> to vector<4x32xf32>
    %86 = arith.addf %84, %85 : vector<4x32xf32>
    %87 = arith.negf %86 : vector<4x32xf32>
    %88 = math.exp %87 : vector<4x32xf32>
    %cst_24 = arith.constant 1.000000e+00 : f32
    %89 = vector.broadcast %cst_24 : f32 to vector<4x32xf32>
    %90 = arith.addf %89, %88 : vector<4x32xf32>
    %91 = arith.divf %89, %90 : vector<4x32xf32>
    %92 = vector.extract_strided_slice %8 {offsets = [8, 0], sizes = [4, 32], strides = [1, 1]} : vector<32x32xf32> to vector<4x32xf32>
    %93 = vector.extract_strided_slice %75 {offsets = [0, 64], sizes = [4, 32], strides = [1, 1]} : vector<4x96xf32> to vector<4x32xf32>
    %94 = vector.broadcast %10 : vector<1x32xf32> to vector<4x32xf32>
    %95 = arith.addf %93, %94 : vector<4x32xf32>
    %96 = arith.mulf %83, %95 : vector<4x32xf32>
    %97 = arith.addf %92, %96 : vector<4x32xf32>
    %98 = math.tanh %97 : vector<4x32xf32>
    %cst_25 = arith.constant 1.000000e+00 : f32
    %99 = vector.broadcast %cst_25 : f32 to vector<4x32xf32>
    %100 = arith.subf %99, %91 : vector<4x32xf32>
    %101 = arith.mulf %100, %98 : vector<4x32xf32>
    %102 = arith.mulf %91, %72 : vector<4x32xf32>
    %103 = arith.addf %101, %102 : vector<4x32xf32>
    %104 = arith.truncf %103 : vector<4x32xf32> to vector<4x32xbf16>
    %c0_26 = arith.constant 0 : index
    %c64 = arith.constant 64 : index
    %105 = vector.load %arg9[%c0_26, %c64] : memref<4x256xbf16, #tpu.memory_space<vmem>>, vector<4x32xbf16>
    tpu.vector_store %arg9[%c0_26, %c64], %104 {strides = array<i32>} : memref<4x256xbf16, #tpu.memory_space<vmem>>, vector<4x32xbf16>,
    %cst_27 = arith.constant dense<0.000000e+00> : vector<4x96xf32>
    %106 = tpu.matmul %104, %9, %cst_27 {dimension_numbers = #tpu.dot_dimension_numbers<[1], [0], [0], [1], [0, 0, 1, 1], [], []>} : vector<4x32xbf16>, vector<32x96xbf16>, vector<4x96xf32> -> vector<4x96xf32>
    %107 = vector.extract_strided_slice %6 {offsets = [12, 0], sizes = [4, 32], strides = [1, 1]} : vector<32x32xf32> to vector<4x32xf32>
    %108 = vector.extract_strided_slice %106 {offsets = [0, 0], sizes = [4, 32], strides = [1, 1]} : vector<4x96xf32> to vector<4x32xf32>
    %109 = arith.addf %107, %108 : vector<4x32xf32>
    %110 = arith.negf %109 : vector<4x32xf32>
    %111 = math.exp %110 : vector<4x32xf32>
    %cst_28 = arith.constant 1.000000e+00 : f32
    %112 = vector.broadcast %cst_28 : f32 to vector<4x32xf32>
    %113 = arith.addf %112, %111 : vector<4x32xf32>
    %114 = arith.divf %112, %113 : vector<4x32xf32>
    %115 = vector.extract_strided_slice %7 {offsets = [12, 0], sizes = [4, 32], strides = [1, 1]} : vector<32x32xf32> to vector<4x32xf32>
    %116 = vector.extract_strided_slice %106 {offsets = [0, 32], sizes = [4, 32], strides = [1, 1]} : vector<4x96xf32> to vector<4x32xf32>
    %117 = arith.addf %115, %116 : vector<4x32xf32>
    %118 = arith.negf %117 : vector<4x32xf32>
    %119 = math.exp %118 : vector<4x32xf32>
    %cst_29 = arith.constant 1.000000e+00 : f32
    %120 = vector.broadcast %cst_29 : f32 to vector<4x32xf32>
    %121 = arith.addf %120, %119 : vector<4x32xf32>
    %122 = arith.divf %120, %121 : vector<4x32xf32>
    %123 = vector.extract_strided_slice %8 {offsets = [12, 0], sizes = [4, 32], strides = [1, 1]} : vector<32x32xf32> to vector<4x32xf32>
    %124 = vector.extract_strided_slice %106 {offsets = [0, 64], sizes = [4, 32], strides = [1, 1]} : vector<4x96xf32> to vector<4x32xf32>
    %125 = vector.broadcast %10 : vector<1x32xf32> to vector<4x32xf32>
    %126 = arith.addf %124, %125 : vector<4x32xf32>
    %127 = arith.mulf %114, %126 : vector<4x32xf32>
    %128 = arith.addf %123, %127 : vector<4x32xf32>
    %129 = math.tanh %128 : vector<4x32xf32>
    %cst_30 = arith.constant 1.000000e+00 : f32
    %130 = vector.broadcast %cst_30 : f32 to vector<4x32xf32>
    %131 = arith.subf %130, %122 : vector<4x32xf32>
    %132 = arith.mulf %131, %129 : vector<4x32xf32>
    %133 = arith.mulf %122, %103 : vector<4x32xf32>
    %134 = arith.addf %132, %133 : vector<4x32xf32>
    %135 = arith.truncf %134 : vector<4x32xf32> to vector<4x32xbf16>
    %c0_31 = arith.constant 0 : index
    %c96 = arith.constant 96 : index
    %136 = vector.load %arg9[%c0_31, %c96] : memref<4x256xbf16, #tpu.memory_space<vmem>>, vector<4x32xbf16>
    tpu.vector_store %arg9[%c0_31, %c96], %135 {strides = array<i32>} : memref<4x256xbf16, #tpu.memory_space<vmem>>, vector<4x32xbf16>,
    %cst_32 = arith.constant dense<0.000000e+00> : vector<4x96xf32>
    %137 = tpu.matmul %135, %9, %cst_32 {dimension_numbers = #tpu.dot_dimension_numbers<[1], [0], [0], [1], [0, 0, 1, 1], [], []>} : vector<4x32xbf16>, vector<32x96xbf16>, vector<4x96xf32> -> vector<4x96xf32>
    %138 = vector.extract_strided_slice %6 {offsets = [16, 0], sizes = [4, 32], strides = [1, 1]} : vector<32x32xf32> to vector<4x32xf32>
    %139 = vector.extract_strided_slice %137 {offsets = [0, 0], sizes = [4, 32], strides = [1, 1]} : vector<4x96xf32> to vector<4x32xf32>
    %140 = arith.addf %138, %139 : vector<4x32xf32>
    %141 = arith.negf %140 : vector<4x32xf32>
    %142 = math.exp %141 : vector<4x32xf32>
    %cst_33 = arith.constant 1.000000e+00 : f32
    %143 = vector.broadcast %cst_33 : f32 to vector<4x32xf32>
    %144 = arith.addf %143, %142 : vector<4x32xf32>
    %145 = arith.divf %143, %144 : vector<4x32xf32>
    %146 = vector.extract_strided_slice %7 {offsets = [16, 0], sizes = [4, 32], strides = [1, 1]} : vector<32x32xf32> to vector<4x32xf32>
    %147 = vector.extract_strided_slice %137 {offsets = [0, 32], sizes = [4, 32], strides = [1, 1]} : vector<4x96xf32> to vector<4x32xf32>
    %148 = arith.addf %146, %147 : vector<4x32xf32>
    %149 = arith.negf %148 : vector<4x32xf32>
    %150 = math.exp %149 : vector<4x32xf32>
    %cst_34 = arith.constant 1.000000e+00 : f32
    %151 = vector.broadcast %cst_34 : f32 to vector<4x32xf32>
    %152 = arith.addf %151, %150 : vector<4x32xf32>
    %153 = arith.divf %151, %152 : vector<4x32xf32>
    %154 = vector.extract_strided_slice %8 {offsets = [16, 0], sizes = [4, 32], strides = [1, 1]} : vector<32x32xf32> to vector<4x32xf32>
    %155 = vector.extract_strided_slice %137 {offsets = [0, 64], sizes = [4, 32], strides = [1, 1]} : vector<4x96xf32> to vector<4x32xf32>
    %156 = vector.broadcast %10 : vector<1x32xf32> to vector<4x32xf32>
    %157 = arith.addf %155, %156 : vector<4x32xf32>
    %158 = arith.mulf %145, %157 : vector<4x32xf32>
    %159 = arith.addf %154, %158 : vector<4x32xf32>
    %160 = math.tanh %159 : vector<4x32xf32>
    %cst_35 = arith.constant 1.000000e+00 : f32
    %161 = vector.broadcast %cst_35 : f32 to vector<4x32xf32>
    %162 = arith.subf %161, %153 : vector<4x32xf32>
    %163 = arith.mulf %162, %160 : vector<4x32xf32>
    %164 = arith.mulf %153, %134 : vector<4x32xf32>
    %165 = arith.addf %163, %164 : vector<4x32xf32>
    %166 = arith.truncf %165 : vector<4x32xf32> to vector<4x32xbf16>
    %c0_36 = arith.constant 0 : index
    %c128 = arith.constant 128 : index
    %167 = vector.load %arg9[%c0_36, %c128] : memref<4x256xbf16, #tpu.memory_space<vmem>>, vector<4x32xbf16>
    tpu.vector_store %arg9[%c0_36, %c128], %166 {strides = array<i32>} : memref<4x256xbf16, #tpu.memory_space<vmem>>, vector<4x32xbf16>,
    %cst_37 = arith.constant dense<0.000000e+00> : vector<4x96xf32>
    %168 = tpu.matmul %166, %9, %cst_37 {dimension_numbers = #tpu.dot_dimension_numbers<[1], [0], [0], [1], [0, 0, 1, 1], [], []>} : vector<4x32xbf16>, vector<32x96xbf16>, vector<4x96xf32> -> vector<4x96xf32>
    %169 = vector.extract_strided_slice %6 {offsets = [20, 0], sizes = [4, 32], strides = [1, 1]} : vector<32x32xf32> to vector<4x32xf32>
    %170 = vector.extract_strided_slice %168 {offsets = [0, 0], sizes = [4, 32], strides = [1, 1]} : vector<4x96xf32> to vector<4x32xf32>
    %171 = arith.addf %169, %170 : vector<4x32xf32>
    %172 = arith.negf %171 : vector<4x32xf32>
    %173 = math.exp %172 : vector<4x32xf32>
    %cst_38 = arith.constant 1.000000e+00 : f32
    %174 = vector.broadcast %cst_38 : f32 to vector<4x32xf32>
    %175 = arith.addf %174, %173 : vector<4x32xf32>
    %176 = arith.divf %174, %175 : vector<4x32xf32>
    %177 = vector.extract_strided_slice %7 {offsets = [20, 0], sizes = [4, 32], strides = [1, 1]} : vector<32x32xf32> to vector<4x32xf32>
    %178 = vector.extract_strided_slice %168 {offsets = [0, 32], sizes = [4, 32], strides = [1, 1]} : vector<4x96xf32> to vector<4x32xf32>
    %179 = arith.addf %177, %178 : vector<4x32xf32>
    %180 = arith.negf %179 : vector<4x32xf32>
    %181 = math.exp %180 : vector<4x32xf32>
    %cst_39 = arith.constant 1.000000e+00 : f32
    %182 = vector.broadcast %cst_39 : f32 to vector<4x32xf32>
    %183 = arith.addf %182, %181 : vector<4x32xf32>
    %184 = arith.divf %182, %183 : vector<4x32xf32>
    %185 = vector.extract_strided_slice %8 {offsets = [20, 0], sizes = [4, 32], strides = [1, 1]} : vector<32x32xf32> to vector<4x32xf32>
    %186 = vector.extract_strided_slice %168 {offsets = [0, 64], sizes = [4, 32], strides = [1, 1]} : vector<4x96xf32> to vector<4x32xf32>
    %187 = vector.broadcast %10 : vector<1x32xf32> to vector<4x32xf32>
    %188 = arith.addf %186, %187 : vector<4x32xf32>
    %189 = arith.mulf %176, %188 : vector<4x32xf32>
    %190 = arith.addf %185, %189 : vector<4x32xf32>
    %191 = math.tanh %190 : vector<4x32xf32>
    %cst_40 = arith.constant 1.000000e+00 : f32
    %192 = vector.broadcast %cst_40 : f32 to vector<4x32xf32>
    %193 = arith.subf %192, %184 : vector<4x32xf32>
    %194 = arith.mulf %193, %191 : vector<4x32xf32>
    %195 = arith.mulf %184, %165 : vector<4x32xf32>
    %196 = arith.addf %194, %195 : vector<4x32xf32>
    %197 = arith.truncf %196 : vector<4x32xf32> to vector<4x32xbf16>
    %c0_41 = arith.constant 0 : index
    %c160 = arith.constant 160 : index
    %198 = vector.load %arg9[%c0_41, %c160] : memref<4x256xbf16, #tpu.memory_space<vmem>>, vector<4x32xbf16>
    tpu.vector_store %arg9[%c0_41, %c160], %197 {strides = array<i32>} : memref<4x256xbf16, #tpu.memory_space<vmem>>, vector<4x32xbf16>,
    %cst_42 = arith.constant dense<0.000000e+00> : vector<4x96xf32>
    %199 = tpu.matmul %197, %9, %cst_42 {dimension_numbers = #tpu.dot_dimension_numbers<[1], [0], [0], [1], [0, 0, 1, 1], [], []>} : vector<4x32xbf16>, vector<32x96xbf16>, vector<4x96xf32> -> vector<4x96xf32>
    %200 = vector.extract_strided_slice %6 {offsets = [24, 0], sizes = [4, 32], strides = [1, 1]} : vector<32x32xf32> to vector<4x32xf32>
    %201 = vector.extract_strided_slice %199 {offsets = [0, 0], sizes = [4, 32], strides = [1, 1]} : vector<4x96xf32> to vector<4x32xf32>
    %202 = arith.addf %200, %201 : vector<4x32xf32>
    %203 = arith.negf %202 : vector<4x32xf32>
    %204 = math.exp %203 : vector<4x32xf32>
    %cst_43 = arith.constant 1.000000e+00 : f32
    %205 = vector.broadcast %cst_43 : f32 to vector<4x32xf32>
    %206 = arith.addf %205, %204 : vector<4x32xf32>
    %207 = arith.divf %205, %206 : vector<4x32xf32>
    %208 = vector.extract_strided_slice %7 {offsets = [24, 0], sizes = [4, 32], strides = [1, 1]} : vector<32x32xf32> to vector<4x32xf32>
    %209 = vector.extract_strided_slice %199 {offsets = [0, 32], sizes = [4, 32], strides = [1, 1]} : vector<4x96xf32> to vector<4x32xf32>
    %210 = arith.addf %208, %209 : vector<4x32xf32>
    %211 = arith.negf %210 : vector<4x32xf32>
    %212 = math.exp %211 : vector<4x32xf32>
    %cst_44 = arith.constant 1.000000e+00 : f32
    %213 = vector.broadcast %cst_44 : f32 to vector<4x32xf32>
    %214 = arith.addf %213, %212 : vector<4x32xf32>
    %215 = arith.divf %213, %214 : vector<4x32xf32>
    %216 = vector.extract_strided_slice %8 {offsets = [24, 0], sizes = [4, 32], strides = [1, 1]} : vector<32x32xf32> to vector<4x32xf32>
    %217 = vector.extract_strided_slice %199 {offsets = [0, 64], sizes = [4, 32], strides = [1, 1]} : vector<4x96xf32> to vector<4x32xf32>
    %218 = vector.broadcast %10 : vector<1x32xf32> to vector<4x32xf32>
    %219 = arith.addf %217, %218 : vector<4x32xf32>
    %220 = arith.mulf %207, %219 : vector<4x32xf32>
    %221 = arith.addf %216, %220 : vector<4x32xf32>
    %222 = math.tanh %221 : vector<4x32xf32>
    %cst_45 = arith.constant 1.000000e+00 : f32
    %223 = vector.broadcast %cst_45 : f32 to vector<4x32xf32>
    %224 = arith.subf %223, %215 : vector<4x32xf32>
    %225 = arith.mulf %224, %222 : vector<4x32xf32>
    %226 = arith.mulf %215, %196 : vector<4x32xf32>
    %227 = arith.addf %225, %226 : vector<4x32xf32>
    %228 = arith.truncf %227 : vector<4x32xf32> to vector<4x32xbf16>
    %c0_46 = arith.constant 0 : index
    %c192 = arith.constant 192 : index
    %229 = vector.load %arg9[%c0_46, %c192] : memref<4x256xbf16, #tpu.memory_space<vmem>>, vector<4x32xbf16>
    tpu.vector_store %arg9[%c0_46, %c192], %228 {strides = array<i32>} : memref<4x256xbf16, #tpu.memory_space<vmem>>, vector<4x32xbf16>,
    %cst_47 = arith.constant dense<0.000000e+00> : vector<4x96xf32>
    %230 = tpu.matmul %228, %9, %cst_47 {dimension_numbers = #tpu.dot_dimension_numbers<[1], [0], [0], [1], [0, 0, 1, 1], [], []>} : vector<4x32xbf16>, vector<32x96xbf16>, vector<4x96xf32> -> vector<4x96xf32>
    %231 = vector.extract_strided_slice %6 {offsets = [28, 0], sizes = [4, 32], strides = [1, 1]} : vector<32x32xf32> to vector<4x32xf32>
    %232 = vector.extract_strided_slice %230 {offsets = [0, 0], sizes = [4, 32], strides = [1, 1]} : vector<4x96xf32> to vector<4x32xf32>
    %233 = arith.addf %231, %232 : vector<4x32xf32>
    %234 = arith.negf %233 : vector<4x32xf32>
    %235 = math.exp %234 : vector<4x32xf32>
    %cst_48 = arith.constant 1.000000e+00 : f32
    %236 = vector.broadcast %cst_48 : f32 to vector<4x32xf32>
    %237 = arith.addf %236, %235 : vector<4x32xf32>
    %238 = arith.divf %236, %237 : vector<4x32xf32>
    %239 = vector.extract_strided_slice %7 {offsets = [28, 0], sizes = [4, 32], strides = [1, 1]} : vector<32x32xf32> to vector<4x32xf32>
    %240 = vector.extract_strided_slice %230 {offsets = [0, 32], sizes = [4, 32], strides = [1, 1]} : vector<4x96xf32> to vector<4x32xf32>
    %241 = arith.addf %239, %240 : vector<4x32xf32>
    %242 = arith.negf %241 : vector<4x32xf32>
    %243 = math.exp %242 : vector<4x32xf32>
    %cst_49 = arith.constant 1.000000e+00 : f32
    %244 = vector.broadcast %cst_49 : f32 to vector<4x32xf32>
    %245 = arith.addf %244, %243 : vector<4x32xf32>
    %246 = arith.divf %244, %245 : vector<4x32xf32>
    %247 = vector.extract_strided_slice %8 {offsets = [28, 0], sizes = [4, 32], strides = [1, 1]} : vector<32x32xf32> to vector<4x32xf32>
    %248 = vector.extract_strided_slice %230 {offsets = [0, 64], sizes = [4, 32], strides = [1, 1]} : vector<4x96xf32> to vector<4x32xf32>
    %249 = vector.broadcast %10 : vector<1x32xf32> to vector<4x32xf32>
    %250 = arith.addf %248, %249 : vector<4x32xf32>
    %251 = arith.mulf %238, %250 : vector<4x32xf32>
    %252 = arith.addf %247, %251 : vector<4x32xf32>
    %253 = math.tanh %252 : vector<4x32xf32>
    %cst_50 = arith.constant 1.000000e+00 : f32
    %254 = vector.broadcast %cst_50 : f32 to vector<4x32xf32>
    %255 = arith.subf %254, %246 : vector<4x32xf32>
    %256 = arith.mulf %255, %253 : vector<4x32xf32>
    %257 = arith.mulf %246, %227 : vector<4x32xf32>
    %258 = arith.addf %256, %257 : vector<4x32xf32>
    %259 = arith.truncf %258 : vector<4x32xf32> to vector<4x32xbf16>
    %c0_51 = arith.constant 0 : index
    %c224 = arith.constant 224 : index
    %260 = vector.load %arg9[%c0_51, %c224] : memref<4x256xbf16, #tpu.memory_space<vmem>>, vector<4x32xbf16>
    tpu.vector_store %arg9[%c0_51, %c224], %259 {strides = array<i32>} : memref<4x256xbf16, #tpu.memory_space<vmem>>, vector<4x32xbf16>,
    %c0_52 = arith.constant 0 : index
    %c0_53 = arith.constant 0 : index
    %261 = vector.load %arg9[%c0_52, %c0_53] : memref<4x256xbf16, #tpu.memory_space<vmem>>, vector<4x256xbf16>
    %c0_54 = arith.constant 0 : index
    %c0_55 = arith.constant 0 : index
    %262 = vector.load %arg6[%c0_54, %c0_55] : memref<256x8xbf16, #tpu.memory_space<vmem>>, vector<256x8xbf16>
    %cst_56 = arith.constant dense<0.000000e+00> : vector<4x8xf32>
    %263 = tpu.matmul %261, %262, %cst_56 {dimension_numbers = #tpu.dot_dimension_numbers<[1], [0], [0], [1], [0, 0, 1, 1], [], []>} : vector<4x256xbf16>, vector<256x8xbf16>, vector<4x8xf32> -> vector<4x8xf32>
    %c0_57 = arith.constant 0 : index
    %c0_58 = arith.constant 0 : index
    %264 = vector.load %arg7[%c0_57, %c0_58] : memref<1x8xf32, #tpu.memory_space<vmem>>, vector<1x8xf32>
    %265 = vector.broadcast %264 : vector<1x8xf32> to vector<4x8xf32>
    %266 = arith.addf %263, %265 : vector<4x8xf32>
    %c0_59 = arith.constant 0 : index
    %c0_60 = arith.constant 0 : index
    %267 = vector.load %arg8[%c0_59, %c0_60] : memref<4x8xf32, #tpu.memory_space<vmem>>, vector<4x8xf32>
    tpu.vector_store %arg8[%c0_59, %c0_60], %266 {strides = array<i32>} : memref<4x8xf32, #tpu.memory_space<vmem>>, vector<4x8xf32>,
    return
  }
  func.func @transform_0(%arg0: i32) -> (i32, i32) {
    %c0_i32 = arith.constant 0 : i32
    %c0_i32_0 = arith.constant 0 : i32
    %c0_i32_1 = arith.constant 0 : i32
    return %c0_i32, %c0_i32_0 : i32, i32
  }
  func.func @transform_1(%arg0: i32) -> (i32, i32) {
    %c0_i32 = arith.constant 0 : i32
    %c0_i32_0 = arith.constant 0 : i32
    %c0_i32_1 = arith.constant 0 : i32
    return %c0_i32, %c0_i32_0 : i32, i32
  }
  func.func @transform_2(%arg0: i32) -> (i32, i32) {
    %c0_i32 = arith.constant 0 : i32
    %c0_i32_0 = arith.constant 0 : i32
    %c0_i32_1 = arith.constant 0 : i32
    return %c0_i32, %c0_i32_0 : i32, i32
  }
  func.func @transform_3(%arg0: i32) -> (i32, i32) {
    %c0_i32 = arith.constant 0 : i32
    %c0_i32_0 = arith.constant 0 : i32
    %c0_i32_1 = arith.constant 0 : i32
    return %c0_i32, %c0_i32_0 : i32, i32
  }
  func.func @transform_4(%arg0: i32) -> (i32, i32) {
    %c0_i32 = arith.constant 0 : i32
    %c0_i32_0 = arith.constant 0 : i32
    %c0_i32_1 = arith.constant 0 : i32
    return %c0_i32, %c0_i32_0 : i32, i32
  }
  func.func @transform_5(%arg0: i32) -> (i32, i32) {
    %c0_i32 = arith.constant 0 : i32
    %c0_i32_0 = arith.constant 0 : i32
    %c0_i32_1 = arith.constant 0 : i32
    return %c0_i32, %c0_i32_0 : i32, i32
  }
  func.func @transform_6(%arg0: i32) -> (i32, i32) {
    %c0_i32 = arith.constant 0 : i32
    %c0_i32_0 = arith.constant 0 : i32
    %c0_i32_1 = arith.constant 0 : i32
    return %c0_i32, %c0_i32_0 : i32, i32
  }
  func.func @transform_7(%arg0: i32) -> (i32, i32) {
    %c0_i32 = arith.constant 0 : i32
    %c0_i32_0 = arith.constant 0 : i32
    %c0_i32_1 = arith.constant 0 : i32
    return %c0_i32, %c0_i32_0 : i32, i32
  }
}

</mosaic_0001>

<llo_original>
// kernel: tpu_custom_call.1
$region0: #{tpu_custom_call.1}
  #allocation0 [shape = 'u32[]', space=smem, size = 0x4, offset = 0x4, fixed_abs, tag = 'smem constant byte address 0x4 - core index']
  #allocation1 [shape = 'u32[144,128]{1,0:T(1,128)}', space=vmem, size = 0x12000, scoped, tag = 'internal scratch']
  #allocation2 [shape = 'bf16[4,256]{1,0:T(4,128)(2,1)}', space=vmem, size = 0x800, scoped, tag = 'scratch operand']
  %s0 = inlined_call_operand.vmem [shape: bf16[32,16], index: 0, kind: input, shape index: {}]
  %s1 = inlined_call_operand.vmem [shape: bf16[16,96], index: 1, kind: input, shape index: {}]
  %s2 = inlined_call_operand.vmem [shape: bf16[32,96], index: 2, kind: input, shape index: {}]
  %s3 = inlined_call_operand.vmem [shape: f32[1,96], index: 3, kind: input, shape index: {}]
  %s4 = inlined_call_operand.vmem [shape: f32[1,32], index: 4, kind: input, shape index: {}]
  %s5 = inlined_call_operand.vmem [shape: bf16[256,8], index: 5, kind: input, shape index: {}]
  %s6 = inlined_call_operand.vmem [shape: f32[1,8], index: 6, kind: input, shape index: {}]
  %s7 = inlined_call_operand.hbm [shape: f32[4,8], index: 7, kind: output, shape index: {}]
  %s8 = sld [smem:[#allocation0]]
  $region38: #{tpu_custom_call.1} parent=0
    _
  %s10 = ssub.s32 1, %s8
  %s11 = scalar_select 0, %s10, %s8
  $region1: #{tpu_custom_call.1} parent=0
    #allocation3 [shape = 'u8[2048]{0}', space=vmem, size = 0x800, scoped, tag = 'output window, operand 0, single buffered']
    #allocation4 [shape = 's32[1]{0}', space=sflag, size = 0x4, scoped, tag = 'scoped memory for tpu_custom_call.1']
    %12 = vsyncpa [#allocation4], 0
    // Predicated region
    $region2: #{tpu_custom_call.1} parent=1 // pred_check
      _
    $region3: #{tpu_custom_call.1} parent=1 // pred_check_branch
      %14 = sbr.rel (0) target = $region5
    $region4: #{tpu_custom_call.1} parent=1 // pred_region
      _
    $region5: #{tpu_custom_call.1} parent=1 // pred_fallthru
      _
    // Predicated region
    $region6: #{tpu_custom_call.1} parent=1 // pred_check
      _
    $region7: #{tpu_custom_call.1} parent=1 // pred_check_branch
      %16 = sbr.rel (0) target = $region9
    $region8: #{tpu_custom_call.1} parent=1 // pred_region
      _
    $region9: #{tpu_custom_call.1} parent=1 // pred_fallthru
      _
    // Predicated region
    $region10: #{tpu_custom_call.1} parent=1 // pred_check
      _
    $region11: #{tpu_custom_call.1} parent=1 // pred_check_branch
      %18 = sbr.rel (0) target = $region13
    $region12: #{tpu_custom_call.1} parent=1 // pred_region
      _
    $region13: #{tpu_custom_call.1} parent=1 // pred_fallthru
      _
    // Predicated region
    $region14: #{tpu_custom_call.1} parent=1 // pred_check
      _
    $region15: #{tpu_custom_call.1} parent=1 // pred_check_branch
      %20 = sbr.rel (0) target = $region17
    $region16: #{tpu_custom_call.1} parent=1 // pred_region
      _
    $region17: #{tpu_custom_call.1} parent=1 // pred_fallthru
      _
    // Predicated region
    $region18: #{tpu_custom_call.1} parent=1 // pred_check
      _
    $region19: #{tpu_custom_call.1} parent=1 // pred_check_branch
      %22 = sbr.rel (0) target = $region21
    $region20: #{tpu_custom_call.1} parent=1 // pred_region
      _
    $region21: #{tpu_custom_call.1} parent=1 // pred_fallthru
      _
    // Predicated region
    $region22: #{tpu_custom_call.1} parent=1 // pred_check
      _
    $region23: #{tpu_custom_call.1} parent=1 // pred_check_branch
      %24 = sbr.rel (0) target = $region25
    $region24: #{tpu_custom_call.1} parent=1 // pred_region
      _
    $region25: #{tpu_custom_call.1} parent=1 // pred_fallthru
      _
    // Predicated region
    $region26: #{tpu_custom_call.1} parent=1 // pred_check
      _
    $region27: #{tpu_custom_call.1} parent=1 // pred_check_branch
      %26 = sbr.rel (0) target = $region29
    $region28: #{tpu_custom_call.1} parent=1 // pred_region
      _
    $region29: #{tpu_custom_call.1} parent=1 // pred_fallthru
      _
    %v28 = vld [vmem:[%s0] sm:$0xf]
    %v29 = vld [vmem:[%s0 + $0x4] sm:$0xf]
    %v30 = vld [vmem:[%s0 + $0x8] sm:$0xf]
    %v31 = vld [vmem:[%s0 + $0xc] sm:$0xf]
    %v32 = vld [vmem:[%s1] sm:$0xf]
    %v33 = vld [vmem:[%s1 + $0x4] sm:$0xf]
    %v34 = vld [vmem:[%s3] sm:$0x1]
    %v36 = vlaneseq
    %v37 = vshrl.u32 %v36, 7
    %v38 = vsub.s32 0, %v37
    %v39 = vrot.slane %v34, %v38
    %v45 = vunpack.c.l.b16 %v28
    %v46 = vunpack.c.l.b16 %v29
    %v47 = vunpack.c.l.b16 %v30
    %v48 = vunpack.c.l.b16 %v31
    %v49 = vpack.c.b16 %v46, %v45
    %v50 = vpack.c.b16 %v48, %v47
    %v53 = vunpack.c.l.b16 %v32
    %v54 = vunpack.c.l.b16 %v33
    %v55 = vpack.c.b16 %v54, %v53
    %vm57 = vcmask 130048
    %v59 = vsel %vm57, %v49, 0
    %v62 = vsel %vm57, %v50, 0
    %64 = vmatprep.subr.bf16.mxu0 0
    %65 = vmatpush1.bf16.msra.mxu0 %v55
    %66 = vmatprep.subr.bf16.mxu0 0
    %67 = vmatpush1.bf16.msra.mxu0 0
    %68 = vmatprep.subr.bf16.mxu0 0
    %69 = vmatpush1.bf16.msra.mxu0 0
    %70 = vmatprep.subr.bf16.mxu0 0
    %71 = vmatpush1.bf16.msra.mxu0 0
    %72 = vmatprep.subr.bf16.mxu0 0
    %73 = vmatpush1.bf16.msra.mxu0 0
    %74 = vmatprep.subr.bf16.mxu0 0
    %75 = vmatpush1.bf16.msra.mxu0 0
    %76 = vmatprep.subr.bf16.mxu0 0
    %77 = vmatpush1.bf16.msra.mxu0 0
    %78 = vmatprep.subr.bf16.mxu0 0
    %79 = vmatpush1.bf16.msra.mxu0 0
    %80 = vmatprep.subr.bf16.mxu0 0
    %81 = vmatpush1.bf16.msra.mxu0 0
    %82 = vmatprep.subr.bf16.mxu0 0
    %83 = vmatpush1.bf16.msra.mxu0 0
    %84 = vmatprep.subr.bf16.mxu0 0
    %85 = vmatpush1.bf16.msra.mxu0 0
    %86 = vmatprep.subr.bf16.mxu0 0
    %87 = vmatpush1.bf16.msra.mxu0 0
    %88 = vmatprep.subr.bf16.mxu0 0
    %89 = vmatpush1.bf16.msra.mxu0 0
    %90 = vmatprep.subr.bf16.mxu0 0
    %91 = vmatpush1.bf16.msra.mxu0 0
    %92 = vmatprep.subr.bf16.mxu0 0
    %93 = vmatpush1.bf16.msra.mxu0 0
    %94 = vmatprep.subr.bf16.mxu0 0
    %95 = vmatpush1.bf16.msra.mxu0 0
    %96 = vmatprep.mubr.bf16.mxu0 0
    %97 = vmatmul.mubr.bf16.gmra.mrb[0].mxu0 %v59
    %v98 = vpop.f32.mrb[0].mxu0
    %v99 = vadd.f32 %v39, %v98
    %v100 = vpop.f32.mrb[0].mxu0
    %v101 = vpop.f32.mrb[0].mxu0
    %v102 = vadd.f32 %v39, %v101
    %v103 = vpop.f32.mrb[0].mxu0
    %104 = vmatprep.mubr.bf16.mxu0 0
    %105 = vmatmul.mubr.bf16.gmra.mrb[0].mxu0 %v62
    %v106 = vpop.f32.mrb[0].mxu0
    %v107 = vadd.f32 %v39, %v106
    %v108 = vpop.f32.mrb[0].mxu0
    %v109 = vpop.f32.mrb[0].mxu0
    %v110 = vadd.f32 %v39, %v109
    %v111 = vpop.f32.mrb[0].mxu0
    %112 = vdwg.mxu0
    %v113 = vld [vmem:[%s2] sm:$0xf]
    %v114 = vld [vmem:[%s2 + $0x4] sm:$0xf]
    %v115 = vld [vmem:[%s2 + $0x8] sm:$0xf]
    %v116 = vld [vmem:[%s2 + $0xc] sm:$0xf]
    %v117 = vld [vmem:[%s4] sm:$0x1]
    %v122 = vunpack.c.l.b16 %v113
    %v123 = vunpack.c.l.b16 %v114
    %v124 = vunpack.c.l.b16 %v115
    %v125 = vunpack.c.l.b16 %v116
    %v126 = vpack.c.b16 %v123, %v122
    %v127 = vpack.c.b16 %v125, %v124
    %vm130 = vcmask 261120
    %v132 = vsel %vm130, 0, 0
    %134 = vmatprep.subr.bf16.mxu0 0
    %135 = vmatpush1.bf16.msra.mxu0 %v126
    %136 = vmatprep.subr.bf16.mxu0 0
    %137 = vmatpush1.bf16.msra.mxu0 %v127
    %138 = vmatprep.subr.bf16.mxu0 0
    %139 = vmatpush1.bf16.msra.mxu0 0
    %140 = vmatprep.subr.bf16.mxu0 0
    %141 = vmatpush1.bf16.msra.mxu0 0
    %142 = vmatprep.subr.bf16.mxu0 0
    %143 = vmatpush1.bf16.msra.mxu0 0
    %144 = vmatprep.subr.bf16.mxu0 0
    %145 = vmatpush1.bf16.msra.mxu0 0
    %146 = vmatprep.subr.bf16.mxu0 0
    %147 = vmatpush1.bf16.msra.mxu0 0
    %148 = vmatprep.subr.bf16.mxu0 0
    %149 = vmatpush1.bf16.msra.mxu0 0
    %150 = vmatprep.subr.bf16.mxu0 0
    %151 = vmatpush1.bf16.msra.mxu0 0
    %152 = vmatprep.subr.bf16.mxu0 0
    %153 = vmatpush1.bf16.msra.mxu0 0
    %154 = vmatprep.subr.bf16.mxu0 0
    %155 = vmatpush1.bf16.msra.mxu0 0
    %156 = vmatprep.subr.bf16.mxu0 0
    %157 = vmatpush1.bf16.msra.mxu0 0
    %158 = vmatprep.subr.bf16.mxu0 0
    %159 = vmatpush1.bf16.msra.mxu0 0
    %160 = vmatprep.subr.bf16.mxu0 0
    %161 = vmatpush1.bf16.msra.mxu0 0
    %162 = vmatprep.subr.bf16.mxu0 0
    %163 = vmatpush1.bf16.msra.mxu0 0
    %164 = vmatprep.subr.bf16.mxu0 0
    %165 = vmatpush1.bf16.msra.mxu0 0
    %166 = vmatprep.mubr.bf16.mxu0 0
    %167 = vmatmul.mubr.bf16.gmra.mrb[0].mxu0 %v132
    %v168 = vpop.f32.mrb[0].mxu0
    %v169 = vadd.f32 0.0, %v168
    %v170 = vpop.f32.mrb[0].mxu0
    %v171 = vpop.f32.mrb[0].mxu0
    %v172 = vpop.f32.mrb[0].mxu0
    %173 = vdwg.mxu0
    %v174 = vadd.f32 %v99, %v169
    %v175 = vxor.u32 %v174, 2147483648
    %v176 = vmul.f32 %v175, 1.442695
    %v177 = vpow.pop %v176
    %v178 = vadd.f32 %v177, 1.0
    %v179 = vrcp.pop %v178
    %v180 = vmul.f32 1.0, %v179
    %v182 = vlaneseq
    %v183 = vshrl.u32 %v182, 7
    %v184 = vsub.s32 0, %v183
    %v185 = vrot.slane %v117, %v184
    %186 = vrot.lane.b32.xlu0 %v185, 64
    %v187 = vpop.permute.xlu0 %186
    %v189 = vadd.f32 %v169, %v187
    %191 = vrot.lane.b32.xlu0 %v189, 64
    %v192 = vpop.permute.xlu0 %191
    %v194 = vmul.f32 %v180, %v192
    %196 = vrot.lane.b32.xlu0 %v194, 64
    %v197 = vpop.permute.xlu0 %196
    %v199 = vadd.f32 %v99, %v197
    %v200 = vtanh.pop %v199
    %v201 = vsub.f32 1.0, %v180
    %203 = vrot.lane.b32.xlu0 %v200, 96
    %v204 = vpop.permute.xlu0 %203
    %v206 = vmul.f32 %v201, %v204
    %v207 = vmul.f32 %v180, 0.0
    %v208 = vadd.f32 %v206, %v207
    %v209 = vpack.c.bf16 %v208, %v208
    %v212 = vunpack.c.l.s4 1983009808
    %v213 = vunpack.c.0.s8 %v212
    %v214 = vlaneseq
    %v215 = vshrl.u32 %v214, 7
    %v216 = vsub.s32 %v213, %v215
    %v217 = vrot.slane %v209, %v216
    %218 = vrot.lane.b32.xlu0 %v217, 96
    %v219 = vpop.permute.xlu0 %218
    %vm221 = vcmask 254976
    %222 = vst.msk [vmem:[#allocation2] sm:$0x3] %vm221, %v219
    %223 = vrot.lane.b32.xlu0 %v209, 96
    %v224 = vpop.permute.xlu0 %223
    %v226 = vsel %vm130, %v224, 0
    %228 = vmatprep.subr.bf16.mxu0 0
    %229 = vmatpush1.bf16.msra.mxu0 %v126
    %230 = vmatprep.subr.bf16.mxu0 0
    %231 = vmatpush1.bf16.msra.mxu0 %v127
    %232 = vmatprep.subr.bf16.mxu0 0
    %233 = vmatpush1.bf16.msra.mxu0 0
    %234 = vmatprep.subr.bf16.mxu0 0
    %235 = vmatpush1.bf16.msra.mxu0 0
    %236 = vmatprep.subr.bf16.mxu0 0
    %237 = vmatpush1.bf16.msra.mxu0 0
    %238 = vmatprep.subr.bf16.mxu0 0
    %239 = vmatpush1.bf16.msra.mxu0 0
    %240 = vmatprep.subr.bf16.mxu0 0
    %241 = vmatpush1.bf16.msra.mxu0 0
    %242 = vmatprep.subr.bf16.mxu0 0
    %243 = vmatpush1.bf16.msra.mxu0 0
    %244 = vmatprep.subr.bf16.mxu0 0
    %245 = vmatpush1.bf16.msra.mxu0 0
    %246 = vmatprep.subr.bf16.mxu0 0
    %247 = vmatpush1.bf16.msra.mxu0 0
    %248 = vmatprep.subr.bf16.mxu0 0
    %249 = vmatpush1.bf16.msra.mxu0 0
    %250 = vmatprep.subr.bf16.mxu0 0
    %251 = vmatpush1.bf16.msra.mxu0 0
    %252 = vmatprep.subr.bf16.mxu0 0
    %253 = vmatpush1.bf16.msra.mxu0 0
    %254 = vmatprep.subr.bf16.mxu0 0
    %255 = vmatpush1.bf16.msra.mxu0 0
    %256 = vmatprep.subr.bf16.mxu0 0
    %257 = vmatpush1.bf16.msra.mxu0 0
    %258 = vmatprep.subr.bf16.mxu0 0
    %259 = vmatpush1.bf16.msra.mxu0 0
    %260 = vmatprep.mubr.bf16.mxu0 0
    %261 = vmatmul.mubr.bf16.gmra.mrb[0].mxu0 %v226
    %v262 = vpop.f32.mrb[0].mxu0
    %v263 = vadd.f32 0.0, %v262
    %v264 = vpop.f32.mrb[0].mxu0
    %v265 = vpop.f32.mrb[0].mxu0
    %v266 = vpop.f32.mrb[0].mxu0
    %267 = vdwg.mxu0
    %v269 = vrot.slane %v263, 4
    %v271 = vadd.f32 %v99, %v269
    %v272 = vxor.u32 %v271, 2147483648
    %v273 = vmul.f32 %v272, 1.442695
    %v274 = vpow.pop %v273
    %v275 = vadd.f32 %v274, 1.0
    %v276 = vrcp.pop %v275
    %v277 = vmul.f32 1.0, %v276
    %v278 = vadd.f32 %v263, %v187
    %v280 = vrot.slane %v278, 4
    %281 = vrot.lane.b32.xlu0 %v280, 64
    %v282 = vpop.permute.xlu0 %281
    %v284 = vmul.f32 %v277, %v282
    %286 = vrot.lane.b32.xlu0 %v284, 64
    %v287 = vpop.permute.xlu0 %286
    %v289 = vadd.f32 %v99, %v287
    %v290 = vtanh.pop %v289
    %v291 = vsub.f32 1.0, %v277
    %293 = vrot.lane.b32.xlu0 %v290, 96
    %v294 = vpop.permute.xlu0 %293
    %v296 = vmul.f32 %v291, %v294
    %v298 = vrot.slane %v208, 4
    %v300 = vmul.f32 %v277, %v298
    %v301 = vadd.f32 %v296, %v300
    %v302 = vpack.c.bf16 %v301, %v301
    %v305 = vunpack.c.l.s4 1983009808
    %v306 = vunpack.c.0.s8 %v305
    %v307 = vlaneseq
    %v308 = vshrl.u32 %v307, 7
    %v309 = vsub.s32 %v306, %v308
    %v310 = vrot.slane %v302, %v309
    %v311 = vcombine.high %v310, %v310
    %vm313 = vcmask 517376
    %314 = vst.msk [vmem:[#allocation2] sm:$0x3] %vm313, %v311
    %v315 = vrot.slane %v302, 2
    %316 = vrot.lane.b32.xlu0 %v315, 96
    %v317 = vpop.permute.xlu0 %316
    %v319 = vsel %vm130, %v317, 0
    %321 = vmatprep.subr.bf16.mxu0 0
    %322 = vmatpush1.bf16.msra.mxu0 %v126
    %323 = vmatprep.subr.bf16.mxu0 0
    %324 = vmatpush1.bf16.msra.mxu0 %v127
    %325 = vmatprep.subr.bf16.mxu0 0
    %326 = vmatpush1.bf16.msra.mxu0 0
    %327 = vmatprep.subr.bf16.mxu0 0
    %328 = vmatpush1.bf16.msra.mxu0 0
    %329 = vmatprep.subr.bf16.mxu0 0
    %330 = vmatpush1.bf16.msra.mxu0 0
    %331 = vmatprep.subr.bf16.mxu0 0
    %332 = vmatpush1.bf16.msra.mxu0 0
    %333 = vmatprep.subr.bf16.mxu0 0
    %334 = vmatpush1.bf16.msra.mxu0 0
    %335 = vmatprep.subr.bf16.mxu0 0
    %336 = vmatpush1.bf16.msra.mxu0 0
    %337 = vmatprep.subr.bf16.mxu0 0
    %338 = vmatpush1.bf16.msra.mxu0 0
    %339 = vmatprep.subr.bf16.mxu0 0
    %340 = vmatpush1.bf16.msra.mxu0 0
    %341 = vmatprep.subr.bf16.mxu0 0
    %342 = vmatpush1.bf16.msra.mxu0 0
    %343 = vmatprep.subr.bf16.mxu0 0
    %344 = vmatpush1.bf16.msra.mxu0 0
    %345 = vmatprep.subr.bf16.mxu0 0
    %346 = vmatpush1.bf16.msra.mxu0 0
    %347 = vmatprep.subr.bf16.mxu0 0
    %348 = vmatpush1.bf16.msra.mxu0 0
    %349 = vmatprep.subr.bf16.mxu0 0
    %350 = vmatpush1.bf16.msra.mxu0 0
    %351 = vmatprep.subr.bf16.mxu0 0
    %352 = vmatpush1.bf16.msra.mxu0 0
    %353 = vmatprep.mubr.bf16.mxu0 0
    %354 = vmatmul.mubr.bf16.gmra.mrb[0].mxu0 %v319
    %v355 = vpop.f32.mrb[0].mxu0
    %v356 = vadd.f32 0.0, %v355
    %v357 = vpop.f32.mrb[0].mxu0
    %v358 = vpop.f32.mrb[0].mxu0
    %v359 = vpop.f32.mrb[0].mxu0
    %360 = vdwg.mxu0
    %v361 = vadd.f32 %v102, %v356
    %v362 = vxor.u32 %v361, 2147483648
    %v363 = vmul.f32 %v362, 1.442695
    %v364 = vpow.pop %v363
    %v365 = vadd.f32 %v364, 1.0
    %v366 = vrcp.pop %v365
    %v367 = vmul.f32 1.0, %v366
    %v368 = vadd.f32 %v356, %v187
    %370 = vrot.lane.b32.xlu0 %v368, 64
    %v371 = vpop.permute.xlu0 %370
    %v373 = vmul.f32 %v367, %v371
    %375 = vrot.lane.b32.xlu0 %v373, 64
    %v376 = vpop.permute.xlu0 %375
    %v378 = vadd.f32 %v102, %v376
    %v379 = vtanh.pop %v378
    %v380 = vsub.f32 1.0, %v367
    %382 = vrot.lane.b32.xlu0 %v379, 96
    %v383 = vpop.permute.xlu0 %382
    %v385 = vmul.f32 %v380, %v383
    %v387 = vrot.slane %v301, 4
    %v389 = vmul.f32 %v367, %v387
    %v390 = vadd.f32 %v385, %v389
    %v391 = vpack.c.bf16 %v390, %v390
    %v394 = vunpack.c.l.s4 1983009808
    %v395 = vunpack.c.0.s8 %v394
    %v396 = vlaneseq
    %v397 = vshrl.u32 %v396, 7
    %v398 = vsub.s32 %v395, %v397
    %v399 = vrot.slane %v391, %v398
    %400 = vrot.lane.b32.xlu0 %v399, 32
    %v401 = vpop.permute.xlu0 %400
    %vm403 = vcmask 779776
    %404 = vst.msk [vmem:[#allocation2] sm:$0x3] %vm403, %v401
    %405 = vrot.lane.b32.xlu0 %v391, 96
    %v406 = vpop.permute.xlu0 %405
    %v408 = vsel %vm130, %v406, 0
    %410 = vmatprep.subr.bf16.mxu0 0
    %411 = vmatpush1.bf16.msra.mxu0 %v126
    %412 = vmatprep.subr.bf16.mxu0 0
    %413 = vmatpush1.bf16.msra.mxu0 %v127
    %414 = vmatprep.subr.bf16.mxu0 0
    %415 = vmatpush1.bf16.msra.mxu0 0
    %416 = vmatprep.subr.bf16.mxu0 0
    %417 = vmatpush1.bf16.msra.mxu0 0
    %418 = vmatprep.subr.bf16.mxu0 0
    %419 = vmatpush1.bf16.msra.mxu0 0
    %420 = vmatprep.subr.bf16.mxu0 0
    %421 = vmatpush1.bf16.msra.mxu0 0
    %422 = vmatprep.subr.bf16.mxu0 0
    %423 = vmatpush1.bf16.msra.mxu0 0
    %424 = vmatprep.subr.bf16.mxu0 0
    %425 = vmatpush1.bf16.msra.mxu0 0
    %426 = vmatprep.subr.bf16.mxu0 0
    %427 = vmatpush1.bf16.msra.mxu0 0
    %428 = vmatprep.subr.bf16.mxu0 0
    %429 = vmatpush1.bf16.msra.mxu0 0
    %430 = vmatprep.subr.bf16.mxu0 0
    %431 = vmatpush1.bf16.msra.mxu0 0
    %432 = vmatprep.subr.bf16.mxu0 0
    %433 = vmatpush1.bf16.msra.mxu0 0
    %434 = vmatprep.subr.bf16.mxu0 0
    %435 = vmatpush1.bf16.msra.mxu0 0
    %436 = vmatprep.subr.bf16.mxu0 0
    %437 = vmatpush1.bf16.msra.mxu0 0
    %438 = vmatprep.subr.bf16.mxu0 0
    %439 = vmatpush1.bf16.msra.mxu0 0
    %440 = vmatprep.subr.bf16.mxu0 0
    %441 = vmatpush1.bf16.msra.mxu0 0
    %442 = vmatprep.mubr.bf16.mxu0 0
    %443 = vmatmul.mubr.bf16.gmra.mrb[0].mxu0 %v408
    %v444 = vpop.f32.mrb[0].mxu0
    %v445 = vadd.f32 0.0, %v444
    %v446 = vpop.f32.mrb[0].mxu0
    %v447 = vpop.f32.mrb[0].mxu0
    %v448 = vpop.f32.mrb[0].mxu0
    %449 = vdwg.mxu0
    %v451 = vrot.slane %v445, 4
    %v453 = vadd.f32 %v102, %v451
    %v454 = vxor.u32 %v453, 2147483648
    %v455 = vmul.f32 %v454, 1.442695
    %v456 = vpow.pop %v455
    %v457 = vadd.f32 %v456, 1.0
    %v458 = vrcp.pop %v457
    %v459 = vmul.f32 1.0, %v458
    %v460 = vadd.f32 %v445, %v187
    %v462 = vrot.slane %v460, 4
    %463 = vrot.lane.b32.xlu0 %v462, 64
    %v464 = vpop.permute.xlu0 %463
    %v466 = vmul.f32 %v459, %v464
    %468 = vrot.lane.b32.xlu0 %v466, 64
    %v469 = vpop.permute.xlu0 %468
    %v471 = vadd.f32 %v102, %v469
    %v472 = vtanh.pop %v471
    %v473 = vsub.f32 1.0, %v459
    %475 = vrot.lane.b32.xlu0 %v472, 96
    %v476 = vpop.permute.xlu0 %475
    %v478 = vmul.f32 %v473, %v476
    %v480 = vrot.slane %v390, 4
    %v482 = vmul.f32 %v459, %v480
    %v483 = vadd.f32 %v478, %v482
    %v484 = vpack.c.bf16 %v483, %v483
    %v487 = vunpack.c.l.s4 1983009808
    %v488 = vunpack.c.0.s8 %v487
    %v489 = vlaneseq
    %v490 = vshrl.u32 %v489, 7
    %v491 = vsub.s32 %v488, %v490
    %v492 = vrot.slane %v484, %v491
    %v493 = vcombine.high %v492, %v492
    %494 = vrot.lane.b32.xlu0 %v493, 64
    %v495 = vpop.permute.xlu0 %494
    %vm497 = vcmask 1042176
    %498 = vst.msk [vmem:[#allocation2] sm:$0x3] %vm497, %v495
    %v499 = vrot.slane %v484, 2
    %500 = vrot.lane.b32.xlu0 %v499, 96
    %v501 = vpop.permute.xlu0 %500
    %v503 = vsel %vm130, %v501, 0
    %505 = vmatprep.subr.bf16.mxu0 0
    %506 = vmatpush1.bf16.msra.mxu0 %v126
    %507 = vmatprep.subr.bf16.mxu0 0
    %508 = vmatpush1.bf16.msra.mxu0 %v127
    %509 = vmatprep.subr.bf16.mxu0 0
    %510 = vmatpush1.bf16.msra.mxu0 0
    %511 = vmatprep.subr.bf16.mxu0 0
    %512 = vmatpush1.bf16.msra.mxu0 0
    %513 = vmatprep.subr.bf16.mxu0 0
    %514 = vmatpush1.bf16.msra.mxu0 0
    %515 = vmatprep.subr.bf16.mxu0 0
    %516 = vmatpush1.bf16.msra.mxu0 0
    %517 = vmatprep.subr.bf16.mxu0 0
    %518 = vmatpush1.bf16.msra.mxu0 0
    %519 = vmatprep.subr.bf16.mxu0 0
    %520 = vmatpush1.bf16.msra.mxu0 0
    %521 = vmatprep.subr.bf16.mxu0 0
    %522 = vmatpush1.bf16.msra.mxu0 0
    %523 = vmatprep.subr.bf16.mxu0 0
    %524 = vmatpush1.bf16.msra.mxu0 0
    %525 = vmatprep.subr.bf16.mxu0 0
    %526 = vmatpush1.bf16.msra.mxu0 0
    %527 = vmatprep.subr.bf16.mxu0 0
    %528 = vmatpush1.bf16.msra.mxu0 0
    %529 = vmatprep.subr.bf16.mxu0 0
    %530 = vmatpush1.bf16.msra.mxu0 0
    %531 = vmatprep.subr.bf16.mxu0 0
    %532 = vmatpush1.bf16.msra.mxu0 0
    %533 = vmatprep.subr.bf16.mxu0 0
    %534 = vmatpush1.bf16.msra.mxu0 0
    %535 = vmatprep.subr.bf16.mxu0 0
    %536 = vmatpush1.bf16.msra.mxu0 0
    %537 = vmatprep.mubr.bf16.mxu0 0
    %538 = vmatmul.mubr.bf16.gmra.mrb[0].mxu0 %v503
    %v539 = vpop.f32.mrb[0].mxu0
    %v540 = vadd.f32 0.0, %v539
    %v541 = vpop.f32.mrb[0].mxu0
    %v542 = vpop.f32.mrb[0].mxu0
    %v543 = vpop.f32.mrb[0].mxu0
    %544 = vdwg.mxu0
    %v545 = vadd.f32 %v107, %v540
    %v546 = vxor.u32 %v545, 2147483648
    %v547 = vmul.f32 %v546, 1.442695
    %v548 = vpow.pop %v547
    %v549 = vadd.f32 %v548, 1.0
    %v550 = vrcp.pop %v549
    %v551 = vmul.f32 1.0, %v550
    %v552 = vadd.f32 %v540, %v187
    %554 = vrot.lane.b32.xlu0 %v552, 64
    %v555 = vpop.permute.xlu0 %554
    %v557 = vmul.f32 %v551, %v555
    %559 = vrot.lane.b32.xlu0 %v557, 64
    %v560 = vpop.permute.xlu0 %559
    %v562 = vadd.f32 %v107, %v560
    %v563 = vtanh.pop %v562
    %v564 = vsub.f32 1.0, %v551
    %566 = vrot.lane.b32.xlu0 %v563, 96
    %v567 = vpop.permute.xlu0 %566
    %v569 = vmul.f32 %v564, %v567
    %v571 = vrot.slane %v483, 4
    %v573 = vmul.f32 %v551, %v571
    %v574 = vadd.f32 %v569, %v573
    %v575 = vpack.c.bf16 %v574, %v574
    %v578 = vunpack.c.l.s4 1983009808
    %v579 = vunpack.c.0.s8 %v578
    %v580 = vlaneseq
    %v581 = vshrl.u32 %v580, 7
    %v582 = vsub.s32 %v579, %v581
    %v583 = vrot.slane %v575, %v582
    %584 = vrot.lane.b32.xlu0 %v583, 96
    %v585 = vpop.permute.xlu0 %584
    %587 = vst.msk [vmem:[#allocation2 + $0x2] sm:$0x3] %vm221, %v585
    %588 = vrot.lane.b32.xlu0 %v575, 96
    %v589 = vpop.permute.xlu0 %588
    %v591 = vsel %vm130, %v589, 0
    %593 = vmatprep.subr.bf16.mxu0 0
    %594 = vmatpush1.bf16.msra.mxu0 %v126
    %595 = vmatprep.subr.bf16.mxu0 0
    %596 = vmatpush1.bf16.msra.mxu0 %v127
    %597 = vmatprep.subr.bf16.mxu0 0
    %598 = vmatpush1.bf16.msra.mxu0 0
    %599 = vmatprep.subr.bf16.mxu0 0
    %600 = vmatpush1.bf16.msra.mxu0 0
    %601 = vmatprep.subr.bf16.mxu0 0
    %602 = vmatpush1.bf16.msra.mxu0 0
    %603 = vmatprep.subr.bf16.mxu0 0
    %604 = vmatpush1.bf16.msra.mxu0 0
    %605 = vmatprep.subr.bf16.mxu0 0
    %606 = vmatpush1.bf16.msra.mxu0 0
    %607 = vmatprep.subr.bf16.mxu0 0
    %608 = vmatpush1.bf16.msra.mxu0 0
    %609 = vmatprep.subr.bf16.mxu0 0
    %610 = vmatpush1.bf16.msra.mxu0 0
    %611 = vmatprep.subr.bf16.mxu0 0
    %612 = vmatpush1.bf16.msra.mxu0 0
    %613 = vmatprep.subr.bf16.mxu0 0
    %614 = vmatpush1.bf16.msra.mxu0 0
    %615 = vmatprep.subr.bf16.mxu0 0
    %616 = vmatpush1.bf16.msra.mxu0 0
    %617 = vmatprep.subr.bf16.mxu0 0
    %618 = vmatpush1.bf16.msra.mxu0 0
    %619 = vmatprep.subr.bf16.mxu0 0
    %620 = vmatpush1.bf16.msra.mxu0 0
    %621 = vmatprep.subr.bf16.mxu0 0
    %622 = vmatpush1.bf16.msra.mxu0 0
    %623 = vmatprep.subr.bf16.mxu0 0
    %624 = vmatpush1.bf16.msra.mxu0 0
    %625 = vmatprep.mubr.bf16.mxu0 0
    %626 = vmatmul.mubr.bf16.gmra.mrb[0].mxu0 %v591
    %v627 = vpop.f32.mrb[0].mxu0
    %v628 = vadd.f32 0.0, %v627
    %v629 = vpop.f32.mrb[0].mxu0
    %v630 = vpop.f32.mrb[0].mxu0
    %v631 = vpop.f32.mrb[0].mxu0
    %632 = vdwg.mxu0
    %v634 = vrot.slane %v628, 4
    %v636 = vadd.f32 %v107, %v634
    %v637 = vxor.u32 %v636, 2147483648
    %v638 = vmul.f32 %v637, 1.442695
    %v639 = vpow.pop %v638
    %v640 = vadd.f32 %v639, 1.0
    %v641 = vrcp.pop %v640
    %v642 = vmul.f32 1.0, %v641
    %v643 = vadd.f32 %v628, %v187
    %v645 = vrot.slane %v643, 4
    %646 = vrot.lane.b32.xlu0 %v645, 64
    %v647 = vpop.permute.xlu0 %646
    %v649 = vmul.f32 %v642, %v647
    %651 = vrot.lane.b32.xlu0 %v649, 64
    %v652 = vpop.permute.xlu0 %651
    %v654 = vadd.f32 %v107, %v652
    %v655 = vtanh.pop %v654
    %v656 = vsub.f32 1.0, %v642
    %658 = vrot.lane.b32.xlu0 %v655, 96
    %v659 = vpop.permute.xlu0 %658
    %v661 = vmul.f32 %v656, %v659
    %v663 = vrot.slane %v574, 4
    %v665 = vmul.f32 %v642, %v663
    %v666 = vadd.f32 %v661, %v665
    %v667 = vpack.c.bf16 %v666, %v666
    %v670 = vunpack.c.l.s4 1983009808
    %v671 = vunpack.c.0.s8 %v670
    %v672 = vlaneseq
    %v673 = vshrl.u32 %v672, 7
    %v674 = vsub.s32 %v671, %v673
    %v675 = vrot.slane %v667, %v674
    %v676 = vcombine.high %v675, %v675
    %678 = vst.msk [vmem:[#allocation2 + $0x2] sm:$0x3] %vm313, %v676
    %v679 = vrot.slane %v667, 2
    %680 = vrot.lane.b32.xlu0 %v679, 96
    %v681 = vpop.permute.xlu0 %680
    %v683 = vsel %vm130, %v681, 0
    %685 = vmatprep.subr.bf16.mxu0 0
    %686 = vmatpush1.bf16.msra.mxu0 %v126
    %687 = vmatprep.subr.bf16.mxu0 0
    %688 = vmatpush1.bf16.msra.mxu0 %v127
    %689 = vmatprep.subr.bf16.mxu0 0
    %690 = vmatpush1.bf16.msra.mxu0 0
    %691 = vmatprep.subr.bf16.mxu0 0
    %692 = vmatpush1.bf16.msra.mxu0 0
    %693 = vmatprep.subr.bf16.mxu0 0
    %694 = vmatpush1.bf16.msra.mxu0 0
    %695 = vmatprep.subr.bf16.mxu0 0
    %696 = vmatpush1.bf16.msra.mxu0 0
    %697 = vmatprep.subr.bf16.mxu0 0
    %698 = vmatpush1.bf16.msra.mxu0 0
    %699 = vmatprep.subr.bf16.mxu0 0
    %700 = vmatpush1.bf16.msra.mxu0 0
    %701 = vmatprep.subr.bf16.mxu0 0
    %702 = vmatpush1.bf16.msra.mxu0 0
    %703 = vmatprep.subr.bf16.mxu0 0
    %704 = vmatpush1.bf16.msra.mxu0 0
    %705 = vmatprep.subr.bf16.mxu0 0
    %706 = vmatpush1.bf16.msra.mxu0 0
    %707 = vmatprep.subr.bf16.mxu0 0
    %708 = vmatpush1.bf16.msra.mxu0 0
    %709 = vmatprep.subr.bf16.mxu0 0
    %710 = vmatpush1.bf16.msra.mxu0 0
    %711 = vmatprep.subr.bf16.mxu0 0
    %712 = vmatpush1.bf16.msra.mxu0 0
    %713 = vmatprep.subr.bf16.mxu0 0
    %714 = vmatpush1.bf16.msra.mxu0 0
    %715 = vmatprep.subr.bf16.mxu0 0
    %716 = vmatpush1.bf16.msra.mxu0 0
    %717 = vmatprep.mubr.bf16.mxu0 0
    %718 = vmatmul.mubr.bf16.gmra.mrb[0].mxu0 %v683
    %v719 = vpop.f32.mrb[0].mxu0
    %v720 = vadd.f32 0.0, %v719
    %v721 = vpop.f32.mrb[0].mxu0
    %v722 = vpop.f32.mrb[0].mxu0
    %v723 = vpop.f32.mrb[0].mxu0
    %724 = vdwg.mxu0
    %v725 = vadd.f32 %v110, %v720
    %v726 = vxor.u32 %v725, 2147483648
    %v727 = vmul.f32 %v726, 1.442695
    %v728 = vpow.pop %v727
    %v729 = vadd.f32 %v728, 1.0
    %v730 = vrcp.pop %v729
    %v731 = vmul.f32 1.0, %v730
    %v732 = vadd.f32 %v720, %v187
    %734 = vrot.lane.b32.xlu0 %v732, 64
    %v735 = vpop.permute.xlu0 %734
    %v737 = vmul.f32 %v731, %v735
    %739 = vrot.lane.b32.xlu0 %v737, 64
    %v740 = vpop.permute.xlu0 %739
    %v742 = vadd.f32 %v110, %v740
    %v743 = vtanh.pop %v742
    %v744 = vsub.f32 1.0, %v731
    %746 = vrot.lane.b32.xlu0 %v743, 96
    %v747 = vpop.permute.xlu0 %746
    %v749 = vmul.f32 %v744, %v747
    %v751 = vrot.slane %v666, 4
    %v753 = vmul.f32 %v731, %v751
    %v754 = vadd.f32 %v749, %v753
    %v755 = vpack.c.bf16 %v754, %v754
    %v758 = vunpack.c.l.s4 1983009808
    %v759 = vunpack.c.0.s8 %v758
    %v760 = vlaneseq
    %v761 = vshrl.u32 %v760, 7
    %v762 = vsub.s32 %v759, %v761
    %v763 = vrot.slane %v755, %v762
    %764 = vrot.lane.b32.xlu0 %v763, 32
    %v765 = vpop.permute.xlu0 %764
    %767 = vst.msk [vmem:[#allocation2 + $0x2] sm:$0x3] %vm403, %v765
    %768 = vrot.lane.b32.xlu0 %v755, 96
    %v769 = vpop.permute.xlu0 %768
    %v771 = vsel %vm130, %v769, 0
    %773 = vmatprep.subr.bf16.mxu0 0
    %774 = vmatpush1.bf16.msra.mxu0 %v126
    %775 = vmatprep.subr.bf16.mxu0 0
    %776 = vmatpush1.bf16.msra.mxu0 %v127
    %777 = vmatprep.subr.bf16.mxu0 0
    %778 = vmatpush1.bf16.msra.mxu0 0
    %779 = vmatprep.subr.bf16.mxu0 0
    %780 = vmatpush1.bf16.msra.mxu0 0
    %781 = vmatprep.subr.bf16.mxu0 0
    %782 = vmatpush1.bf16.msra.mxu0 0
    %783 = vmatprep.subr.bf16.mxu0 0
    %784 = vmatpush1.bf16.msra.mxu0 0
    %785 = vmatprep.subr.bf16.mxu0 0
    %786 = vmatpush1.bf16.msra.mxu0 0
    %787 = vmatprep.subr.bf16.mxu0 0
    %788 = vmatpush1.bf16.msra.mxu0 0
    %789 = vmatprep.subr.bf16.mxu0 0
    %790 = vmatpush1.bf16.msra.mxu0 0
    %791 = vmatprep.subr.bf16.mxu0 0
    %792 = vmatpush1.bf16.msra.mxu0 0
    %793 = vmatprep.subr.bf16.mxu0 0
    %794 = vmatpush1.bf16.msra.mxu0 0
    %795 = vmatprep.subr.bf16.mxu0 0
    %796 = vmatpush1.bf16.msra.mxu0 0
    %797 = vmatprep.subr.bf16.mxu0 0
    %798 = vmatpush1.bf16.msra.mxu0 0
    %799 = vmatprep.subr.bf16.mxu0 0
    %800 = vmatpush1.bf16.msra.mxu0 0
    %801 = vmatprep.subr.bf16.mxu0 0
    %802 = vmatpush1.bf16.msra.mxu0 0
    %803 = vmatprep.subr.bf16.mxu0 0
    %804 = vmatpush1.bf16.msra.mxu0 0
    %805 = vmatprep.mubr.bf16.mxu0 0
    %806 = vmatmul.mubr.bf16.gmra.mrb[0].mxu0 %v771
    %v807 = vpop.f32.mrb[0].mxu0
    %v808 = vadd.f32 0.0, %v807
    %v809 = vpop.f32.mrb[0].mxu0
    %v810 = vpop.f32.mrb[0].mxu0
    %v811 = vpop.f32.mrb[0].mxu0
    %812 = vdwg.mxu0
    %v814 = vrot.slane %v808, 4
    %v816 = vadd.f32 %v110, %v814
    %v817 = vxor.u32 %v816, 2147483648
    %v818 = vmul.f32 %v817, 1.442695
    %v819 = vpow.pop %v818
    %v820 = vadd.f32 %v819, 1.0
    %v821 = vrcp.pop %v820
    %v822 = vmul.f32 1.0, %v821
    %v823 = vadd.f32 %v808, %v187
    %v825 = vrot.slane %v823, 4
    %826 = vrot.lane.b32.xlu0 %v825, 64
    %v827 = vpop.permute.xlu0 %826
    %v829 = vmul.f32 %v822, %v827
    %831 = vrot.lane.b32.xlu0 %v829, 64
    %v832 = vpop.permute.xlu0 %831
    %v834 = vadd.f32 %v110, %v832
    %v835 = vtanh.pop %v834
    %v836 = vsub.f32 1.0, %v822
    %838 = vrot.lane.b32.xlu0 %v835, 96
    %v839 = vpop.permute.xlu0 %838
    %v841 = vmul.f32 %v836, %v839
    %v843 = vrot.slane %v754, 4
    %v845 = vmul.f32 %v822, %v843
    %v846 = vadd.f32 %v841, %v845
    %v847 = vpack.c.bf16 %v846, %v846
    %v850 = vunpack.c.l.s4 1983009808
    %v851 = vunpack.c.0.s8 %v850
    %v852 = vlaneseq
    %v853 = vshrl.u32 %v852, 7
    %v854 = vsub.s32 %v851, %v853
    %v855 = vrot.slane %v847, %v854
    %v856 = vcombine.high %v855, %v855
    %857 = vrot.lane.b32.xlu0 %v856, 64
    %v858 = vpop.permute.xlu0 %857
    %860 = vst.msk [vmem:[#allocation2 + $0x2] sm:$0x3] %vm497, %v858
    %v861 = vld [vmem:[#allocation2] sm:$0xf]
    %v862 = vld [vmem:[%s5] sm:$0xf]
    %v863 = vld [vmem:[%s5 + $0x4] sm:$0xf]
    %v864 = vld [vmem:[%s5 + $0x8] sm:$0xf]
    %v865 = vld [vmem:[%s5 + $0xc] sm:$0xf]
    %v866 = vld [vmem:[%s5 + $0x10] sm:$0xf]
    %v867 = vld [vmem:[%s5 + $0x14] sm:$0xf]
    %v868 = vld [vmem:[%s5 + $0x18] sm:$0xf]
    %v869 = vld [vmem:[%s5 + $0x1c] sm:$0xf]
    %v870 = vld [vmem:[%s5 + $0x20] sm:$0xf]
    %v871 = vld [vmem:[%s5 + $0x24] sm:$0xf]
    %v872 = vld [vmem:[%s5 + $0x28] sm:$0xf]
    %v873 = vld [vmem:[%s5 + $0x2c] sm:$0xf]
    %v874 = vld [vmem:[%s5 + $0x30] sm:$0xf]
    %v875 = vld [vmem:[%s5 + $0x34] sm:$0xf]
    %v876 = vld [vmem:[%s5 + $0x38] sm:$0xf]
    %v877 = vld [vmem:[%s5 + $0x3c] sm:$0xf]
    %v878 = vld [vmem:[%s5 + $0x40] sm:$0xf]
    %v879 = vld [vmem:[%s5 + $0x44] sm:$0xf]
    %v880 = vld [vmem:[%s5 + $0x48] sm:$0xf]
    %v881 = vld [vmem:[%s5 + $0x4c] sm:$0xf]
    %v882 = vld [vmem:[%s5 + $0x50] sm:$0xf]
    %v883 = vld [vmem:[%s5 + $0x54] sm:$0xf]
    %v884 = vld [vmem:[%s5 + $0x58] sm:$0xf]
    %v885 = vld [vmem:[%s5 + $0x5c] sm:$0xf]
    %v886 = vld [vmem:[%s5 + $0x60] sm:$0xf]
    %v887 = vld [vmem:[%s5 + $0x64] sm:$0xf]
    %v888 = vld [vmem:[%s5 + $0x68] sm:$0xf]
    %v889 = vld [vmem:[%s5 + $0x6c] sm:$0xf]
    %v890 = vld [vmem:[%s5 + $0x70] sm:$0xf]
    %v891 = vld [vmem:[%s5 + $0x74] sm:$0xf]
    %v892 = vld [vmem:[%s5 + $0x78] sm:$0xf]
    %v893 = vld [vmem:[%s5 + $0x7c] sm:$0xf]
    %v894 = vld [vmem:[%s6] sm:$0x1]
    %v896 = vlaneseq
    %v897 = vshrl.u32 %v896, 7
    %v898 = vsub.s32 0, %v897
    %v899 = vrot.slane %v894, %v898
    %v903 = vunpack.c.l.s4 1983009808
    %v904 = vunpack.c.0.s8 %v903
    %v905 = vlaneseq
    %v906 = vshrl.u32 %v905, 7
    %v907 = vsub.s32 %v904, %v906
    %v908 = vrot.slane %v861, %v907
    %v909 = vcombine.high %v908, %v908
    %v944 = vunpack.c.l.b16 %v862
    %v945 = vunpack.c.l.b16 %v863
    %v946 = vunpack.c.l.b16 %v864
    %v947 = vunpack.c.l.b16 %v865
    %v948 = vunpack.c.l.b16 %v866
    %v949 = vunpack.c.l.b16 %v867
    %v950 = vunpack.c.l.b16 %v868
    %v951 = vunpack.c.l.b16 %v869
    %v952 = vunpack.c.l.b16 %v870
    %v953 = vunpack.c.l.b16 %v871
    %v954 = vunpack.c.l.b16 %v872
    %v955 = vunpack.c.l.b16 %v873
    %v956 = vunpack.c.l.b16 %v874
    %v957 = vunpack.c.l.b16 %v875
    %v958 = vunpack.c.l.b16 %v876
    %v959 = vunpack.c.l.b16 %v877
    %v960 = vunpack.c.l.b16 %v878
    %v961 = vunpack.c.l.b16 %v879
    %v962 = vunpack.c.l.b16 %v880
    %v963 = vunpack.c.l.b16 %v881
    %v964 = vunpack.c.l.b16 %v882
    %v965 = vunpack.c.l.b16 %v883
    %v966 = vunpack.c.l.b16 %v884
    %v967 = vunpack.c.l.b16 %v885
    %v968 = vunpack.c.l.b16 %v886
    %v969 = vunpack.c.l.b16 %v887
    %v970 = vunpack.c.l.b16 %v888
    %v971 = vunpack.c.l.b16 %v889
    %v972 = vunpack.c.l.b16 %v890
    %v973 = vunpack.c.l.b16 %v891
    %v974 = vunpack.c.l.b16 %v892
    %v975 = vunpack.c.l.b16 %v893
    %v976 = vpack.c.b16 %v945, %v944
    %v977 = vpack.c.b16 %v947, %v946
    %v978 = vpack.c.b16 %v949, %v948
    %v979 = vpack.c.b16 %v951, %v950
    %v980 = vpack.c.b16 %v953, %v952
    %v981 = vpack.c.b16 %v955, %v954
    %v982 = vpack.c.b16 %v957, %v956
    %v983 = vpack.c.b16 %v959, %v958
    %v984 = vpack.c.b16 %v961, %v960
    %v985 = vpack.c.b16 %v963, %v962
    %v986 = vpack.c.b16 %v965, %v964
    %v987 = vpack.c.b16 %v967, %v966
    %v988 = vpack.c.b16 %v969, %v968
    %v989 = vpack.c.b16 %v971, %v970
    %v990 = vpack.c.b16 %v973, %v972
    %v991 = vpack.c.b16 %v975, %v974
    %1008 = vmatprep.subr.bf16.mxu0 0
    %1009 = vmatpush1.bf16.msra.mxu0 %v976
    %1010 = vmatprep.subr.bf16.mxu0 0
    %1011 = vmatpush1.bf16.msra.mxu0 %v977
    %1012 = vmatprep.subr.bf16.mxu0 0
    %1013 = vmatpush1.bf16.msra.mxu0 %v978
    %1014 = vmatprep.subr.bf16.mxu0 0
    %1015 = vmatpush1.bf16.msra.mxu0 %v979
    %1016 = vmatprep.subr.bf16.mxu0 0
    %1017 = vmatpush1.bf16.msra.mxu0 %v980
    %1018 = vmatprep.subr.bf16.mxu0 0
    %1019 = vmatpush1.bf16.msra.mxu0 %v981
    %1020 = vmatprep.subr.bf16.mxu0 0
    %1021 = vmatpush1.bf16.msra.mxu0 %v982
    %1022 = vmatprep.subr.bf16.mxu0 0
    %1023 = vmatpush1.bf16.msra.mxu0 %v983
    %1024 = vmatprep.subr.bf16.mxu0 0
    %1025 = vmatpush1.bf16.msra.mxu0 %v984
    %1026 = vmatprep.subr.bf16.mxu0 0
    %1027 = vmatpush1.bf16.msra.mxu0 %v985
    %1028 = vmatprep.subr.bf16.mxu0 0
    %1029 = vmatpush1.bf16.msra.mxu0 %v986
    %1030 = vmatprep.subr.bf16.mxu0 0
    %1031 = vmatpush1.bf16.msra.mxu0 %v987
    %1032 = vmatprep.subr.bf16.mxu0 0
    %1033 = vmatpush1.bf16.msra.mxu0 %v988
    %1034 = vmatprep.subr.bf16.mxu0 0
    %1035 = vmatpush1.bf16.msra.mxu0 %v989
    %1036 = vmatprep.subr.bf16.mxu0 0
    %1037 = vmatpush1.bf16.msra.mxu0 %v990
    %1038 = vmatprep.subr.bf16.mxu0 0
    %1039 = vmatpush1.bf16.msra.mxu0 %v991
    %1040 = vmatprep.mubr.bf16.mxu0 %v909
    %1041 = vmatmul.mubr.bf16.gmra.mrb[0].mxu0 %v908
    %v1042 = vpop.f32.mrb[0].mxu0
    %v1043 = vadd.f32 %v899, %v1042
    %v1044 = vpop.f32.mrb[0].mxu0
    %v1045 = vpop.f32.mrb[0].mxu0
    %v1046 = vpop.f32.mrb[0].mxu0
    %1047 = vdwg.mxu0
    %vm1048 = vcmask 60416
    %1049 = vst.msk [vmem:[#allocation3] sm:$0xf] %vm1048, %v1043
    // Predicated region
    $region30: #{tpu_custom_call.1} parent=1 // pred_check
      _
    $region31: #{tpu_custom_call.1} parent=1 // pred_check_branch
      %1051 = sbr.rel (0) target = $region33
    $region32: #{tpu_custom_call.1} parent=1 // pred_region
      %s1053 = ssub.s32 64, 64
      %1054 = vsyncadd [#allocation4], %s1053
      %s1056 = sshll.u32 [#allocation3], 4
      %s1057 = int_to_ptr.vmem [resolvable:$true] %s1056
      %1059 = dma.vmem_to_hbm [thread:$0]  %s1057, 64, %s7, [#allocation4]
    $region33: #{tpu_custom_call.1} parent=1 // pred_fallthru
      _
    // Predicated region
    $region34: #{tpu_custom_call.1} parent=1 // pred_check
      _
    $region35: #{tpu_custom_call.1} parent=1 // pred_check_branch
      %1061 = sbr.rel (0) target = $region37
    $region36: #{tpu_custom_call.1} parent=1 // pred_region
      %1062 = dma.done [#allocation4], 64
    $region37: #{tpu_custom_call.1} parent=1 // pred_fallthru
      _
    %1063 = vsyncpa [#allocation4], 1

</llo_original>
